<compile_context>
chip_gen: v6e
topology: v6e:2x2x1
jax: 0.10.0
libtpu: 0.0.40
codegen_flags: <defaults>
</compile_context>

<pallas_src>
import jax
import jax.numpy as jnp
from jax.experimental import pallas as pl
from jax.experimental.pallas import tpu as pltpu

PAD_ID = 0


def _round_up(x, m):
    return ((x + m - 1) // m) * m


def rnn_forward(x_tokens, params, *, time_chunk=16, batch_block=128,
                lane_align=128, min_batch_blocks=1,
                compute_dtype=jnp.bfloat16):
    """x_tokens: int32 (B, T) token ids. Returns (B, output_size) float32.

    lane_align: pad H so each gate block starts on a lane boundary (128; use 256
                on v6e/v7x for full-MXU-tile K/N).
    min_batch_blocks: set to 2 on v7x so both TensorCores get a batch block.
    """
    emb = params["emb"]                        # (V, E) f32, row 0 (PAD) is zero
    wih, whh = params["wih"], params["whh"]    # (3, E, H), (3, H, H), gates [r,z,n]
    lw, lb = params["lw"], params["lb"]        # (H, O), (1, O)

    B, T = x_tokens.shape
    E = emb.shape[1]
    H = whh.shape[-1]
    O = lw.shape[-1]
    cd = compute_dtype

    # ---- batch blocking: sublane multiple, "parallel" grid axis ----
    batch_block = max(8, (batch_block // 8) * 8)
    B8 = max(8, _round_up(B, 8))
    Bt = min(batch_block, B8)
    if min_batch_blocks > 1:
        # v7x: guarantee >= min_batch_blocks blocks on the parallel axis.
        Bt = min(Bt, max(8, _round_up(-(-B8 // min_batch_blocks), 8)))
    B_pad = _round_up(B8, Bt)
    n_b = B_pad // Bt

    # ---- hidden padding so every gate slice is lane-aligned (free view) ----
    Hp = _round_up(H, lane_align)
    dH = Hp - H
    G = 3 * Hp

    # ---- fused, gate-aligned weights; bf16 MXU operands ----
    # Padded gate columns/rows are zero => padded hidden units remain exactly 0
    # (r=z=0.5, n=0, h'=n+z*(h-n)=0) and never perturb real units.
    wih_f = jnp.concatenate(
        [jnp.pad(wih[g], ((0, 0), (0, dH))) for g in range(3)], axis=1).astype(cd)   # (E, 3Hp)
    whh_f = jnp.concatenate(
        [jnp.pad(whh[g], ((0, dH), (0, dH))) for g in range(3)], axis=1).astype(cd)  # (Hp, 3Hp)
    lw_p = jnp.pad(lw, ((0, dH), (0, 0))).astype(cd)                                 # (Hp, O)

    # ---- time-major embedding gather (no separate transpose), bf16 stream ----
    e = emb.astype(cd)[x_tokens.T]             # (T, B, E) bf16
    if B_pad != B:
        e = jnp.pad(e, ((0, 0), (0, B_pad - B), (0, 0)))

    # ---- chunk the time axis; ragged tail handled by a static-trip-count loop ----
    Tc = max(1, min(time_chunk, T))
    n_chunks = -(-T // Tc)
    T_pad = n_chunks * Tc
    T_rem = T - (n_chunks - 1) * Tc            # static length of the last chunk
    if T_pad != T:
        e = jnp.pad(e, ((0, T_pad - T), (0, 0), (0, 0)))

    def kernel(e_ref, wih_ref, whh_ref, lw_ref, out_ref, h_ref, xg_ref):
        c = pl.program_id(1)                   # time-chunk index (sequential)
        last = pl.num_programs(1) - 1

        @pl.when(c == 0)
        def _init():
            h_ref[...] = jnp.zeros_like(h_ref)

        w_ih = wih_ref[...]                    # (E, 3Hp) bf16, resident
        w_hh = whh_ref[...]                    # (Hp, 3Hp) bf16, resident

        # Chunk-level input projection into VMEM scratch — NOT on the serial
        # h-dependency chain.  Statically unrolled rank-2 matmuls (one per step)
        # keep Mosaic lowering trivial; the (T,B,3H) pre-gate tensor never
        # touches HBM.
        for j in range(Tc):
            xg_ref[j] = jnp.dot(e_ref[j], w_ih, preferred_element_type=jnp.float32)

        def step(j, h):
            xg_t = xg_ref[j]                   # (Bt, 3Hp) f32 pre-gates, this step
            hg = jnp.dot(h.astype(cd), w_hh,
                         preferred_element_type=jnp.float32)   # one fused MXU push
            r = jax.nn.sigmoid(xg_t[:, :Hp] + hg[:, :Hp])
            z = jax.nn.sigmoid(xg_t[:, Hp:2 * Hp] + hg[:, Hp:2 * Hp])
            n = jnp.tanh(xg_t[:, 2 * Hp:] + r * hg[:, 2 * Hp:])
            return n + z * (h - n)             # == (1-z)*n + z*h, one fewer mul

        if T_rem == Tc:
            # T divides evenly into chunks: single unmasked path.
            h_ref[...] = jax.lax.fori_loop(0, Tc, step, h_ref[...], unroll=True)
        else:
            @pl.when(c != last)
            def _full_chunk():
                h_ref[...] = jax.lax.fori_loop(0, Tc, step, h_ref[...], unroll=True)

            @pl.when(c == last)
            def _ragged_tail():
                # Static trip count T_rem < Tc: no per-step masking anywhere.
                h_ref[...] = jax.lax.fori_loop(0, T_rem, step, h_ref[...],
                                               unroll=True)

        @pl.when(c == last)
        def _final():
            # Fused final Linear (bias folded outside the kernel).
            out_ref[...] = jnp.dot(h_ref[...].astype(cd), lw_ref[...],
                                   preferred_element_type=jnp.float32
                                   ).astype(out_ref.dtype)

    # ---- explicit VMEM budget (valid on v5e/v6e/v7x; cap at v7x's 64 MiB) ----
    bcd = jnp.dtype(cd).itemsize
    vmem_need = (2 * Tc * Bt * E * bcd                       # streamed e (dbl-buffered)
                 + 2 * (E * G + Hp * G + Hp * O) * bcd       # resident weights (dbl-buffered)
                 + 2 * Bt * O * 4                            # output block
                 + Bt * Hp * 4                               # hidden-state scratch
                 + Tc * Bt * G * 4)                          # chunk pre-gate scratch (f32)
    vmem_limit = int(min(64 * 2**20, max(32 * 2**20, int(1.5 * vmem_need))))

    out = pl.pallas_call(
        kernel,
        out_shape=jax.ShapeDtypeStruct((B_pad, O), jnp.float32),
        grid_spec=pltpu.PrefetchScalarGridSpec(
            num_scalar_prefetch=0,
            grid=(n_b, n_chunks),
            in_specs=[
                # streamed bf16 embedded inputs: one (Tc, Bt, E) block per step
                pl.BlockSpec((Tc, Bt, E), lambda b, c: (c, b, 0)),
                # resident weights: constant block index => fetched once per core
                pl.BlockSpec((E, G), lambda b, c: (0, 0)),
                pl.BlockSpec((Hp, G), lambda b, c: (0, 0)),
                pl.BlockSpec((Hp, O), lambda b, c: (0, 0)),
            ],
            out_specs=pl.BlockSpec((Bt, O), lambda b, c: (b, 0)),
            scratch_shapes=[
                pltpu.VMEM((Bt, Hp), jnp.float32),       # recurrent hidden state
                pltpu.VMEM((Tc, Bt, G), jnp.float32),    # per-chunk pre-gates
            ],
        ),
        compiler_params=pltpu.CompilerParams(
            # batch blocks are independent -> "parallel" (v7x dual-TC);
            # the recurrence over time chunks must stay sequential.
            dimension_semantics=("parallel", "arbitrary"),
            vmem_limit_bytes=vmem_limit,
        ),
    )(e, wih_f, whh_f, lw_p)

    # Linear bias folded outside the kernel; drop batch padding rows.
    return (out + lb[0])[:B]


def rnn_forward_ref(x_tokens, params, compute_dtype=jnp.bfloat16):
    """Pure-JAX reference (PyTorch GRU bias=False semantics) using the same
    mixed-precision policy as the kernel (bf16 MXU operands, f32 math)."""
    emb = params["emb"]
    wih, whh = params["wih"], params["whh"]
    lw, lb = params["lw"], params["lb"]
    cd = compute_dtype
    wih_f = jnp.concatenate([wih[0], wih[1], wih[2]], axis=1).astype(cd)
    whh_f = jnp.concatenate([whh[0], whh[1], whh[2]], axis=1).astype(cd)
    H = whh.shape[-1]
    e = emb[x_tokens]                          # (B, T, E)
    B, T, _ = e.shape
    h = jnp.zeros((B, H), jnp.float32)
    for t in range(T):
        ig = jnp.dot(e[:, t, :].astype(cd), wih_f, preferred_element_type=jnp.float32)
        hg = jnp.dot(h.astype(cd), whh_f, preferred_element_type=jnp.float32)
        r = jax.nn.sigmoid(ig[:, :H] + hg[:, :H])
        z = jax.nn.sigmoid(ig[:, H:2 * H] + hg[:, H:2 * H])
        n = jnp.tanh(ig[:, 2 * H:] + r * hg[:, 2 * H:])
        h = (1.0 - z) * n + z * h
    logits = jnp.dot(h.astype(cd), lw.astype(cd), preferred_element_type=jnp.float32)
    return logits + lb[0]


def init_params(key, vocab, E, H, O):
    k_emb, k_ih, k_hh, k_lw, k_lb = jax.random.split(key, 5)
    emb = jax.random.normal(k_emb, (vocab, E), jnp.float32)
    emb = emb.at[0].set(0.0)                   # padding_idx = PAD_ID = 0
    s = 1.0 / jnp.sqrt(jnp.float32(H))
    wih = jax.random.uniform(k_ih, (3, E, H), jnp.float32, -s, s)
    whh = jax.random.uniform(k_hh, (3, H, H), jnp.float32, -s, s)
    lw = jax.random.uniform(k_lw, (H, O), jnp.float32, -s, s)
    lb = jax.random.uniform(k_lb, (1, O), jnp.float32, -s, s)
    return {"emb": emb, "wih": wih, "whh": whh, "lw": lw, "lb": lb}


if __name__ == "__main__":
    VOCAB, E, H, O = 20, 16, 32, 8   # input_size, embedding_size, hidden_size, output_size
    B, T = 2, 10                     # batch, sequence length (ragged vs time_chunk=4)

    key = jax.random.PRNGKey(0)
    k_p, k_x = jax.random.split(key)
    params = init_params(k_p, VOCAB, E, H, O)

    x = jax.random.randint(k_x, (B, T), 1, VOCAB, dtype=jnp.int32)
    x = x.at[0, T - 2:].set(PAD_ID)  # a couple of PAD tokens (padding_idx=0)

    out = jax.block_until_ready(rnn_forward(x, params, time_chunk=4))
    ref = jax.block_until_ready(rnn_forward_ref(x, params))

    assert out.shape == (B, O), out.shape
    err = float(jnp.max(jnp.abs(out - ref)))
    assert jnp.allclose(out, ref, atol=5e-3, rtol=5e-3), f"max abs err {err}"
    print("KERNEL_OK")
</pallas_src>

<mosaic_0001>
module attributes {stable_mosaic.version = 11 : i64} {
  func.func @kernel(%arg0: i32, %arg1: i32, %arg2: memref<4x8x16xbf16, #tpu.memory_space<vmem>>, %arg3: memref<16x384xbf16, #tpu.memory_space<vmem>>, %arg4: memref<128x384xbf16, #tpu.memory_space<vmem>>, %arg5: memref<128x8xbf16, #tpu.memory_space<vmem>>, %arg6: memref<8x8xf32, #tpu.memory_space<vmem>>, %arg7: memref<8x128xf32, #tpu.memory_space<vmem>>, %arg8: memref<4x8x384xf32, #tpu.memory_space<vmem>>) attributes {dimension_semantics = [#tpu.dimension_semantics<parallel>, #tpu.dimension_semantics<arbitrary>], iteration_bounds = array<i64: 1, 3>, scalar_prefetch = 0 : i64, scratch_operands = 2 : i64, tpu.core_type = #tpu.core_type<tc>, window_params = [{transform_indices = @transform_0, window_bounds = array<i64: 4, 8, 16>}, {pipeline_mode = #tpu.pipeline_mode<synchronous>, transform_indices = @transform_1, window_bounds = array<i64: 16, 384>}, {pipeline_mode = #tpu.pipeline_mode<synchronous>, transform_indices = @transform_2, window_bounds = array<i64: 128, 384>}, {pipeline_mode = #tpu.pipeline_mode<synchronous>, transform_indices = @transform_3, window_bounds = array<i64: 128, 8>}, {transform_indices = @transform_4, window_bounds = array<i64: 8, 8>}]} {
    %c0_i32 = arith.constant 0 : i32
    %0 = arith.cmpi eq, %arg1, %c0_i32 : i32
    %1 = arith.extui %0 : i1 to i32
    %c0_i32_0 = arith.constant 0 : i32
    %2 = arith.cmpi ne, %1, %c0_i32_0 : i32
    scf.if %2 {
      %cst_33 = arith.constant 0.000000e+00 : f32
      %38 = vector.broadcast %cst_33 : f32 to vector<8x128xf32>
      %c0_34 = arith.constant 0 : index
      %c0_35 = arith.constant 0 : index
      %39 = vector.load %arg7[%c0_34, %c0_35] : memref<8x128xf32, #tpu.memory_space<vmem>>, vector<8x128xf32>
      tpu.vector_store %arg7[%c0_34, %c0_35], %38 {strides = array<i32>} : memref<8x128xf32, #tpu.memory_space<vmem>>, vector<8x128xf32>,
    } else {
    }
    %c0 = arith.constant 0 : index
    %c0_1 = arith.constant 0 : index
    %3 = vector.load %arg3[%c0, %c0_1] : memref<16x384xbf16, #tpu.memory_space<vmem>>, vector<16x384xbf16>
    %c0_2 = arith.constant 0 : index
    %c0_3 = arith.constant 0 : index
    %4 = vector.load %arg4[%c0_2, %c0_3] : memref<128x384xbf16, #tpu.memory_space<vmem>>, vector<128x384xbf16>
    %c0_4 = arith.constant 0 : index
    %c0_5 = arith.constant 0 : index
    %c0_6 = arith.constant 0 : index
    %5 = vector.load %arg2[%c0_4, %c0_5, %c0_6] : memref<4x8x16xbf16, #tpu.memory_space<vmem>>, vector<1x8x16xbf16>
    %6 = vector.shape_cast %5 : vector<1x8x16xbf16> to vector<8x16xbf16>
    %cst = arith.constant dense<0.000000e+00> : vector<8x384xf32>
    %7 = tpu.matmul %6, %3, %cst {dimension_numbers = #tpu.dot_dimension_numbers<[1], [0], [0], [1], [0, 0, 1, 1], [], []>} : vector<8x16xbf16>, vector<16x384xbf16>, vector<8x384xf32> -> vector<8x384xf32>
    %c0_7 = arith.constant 0 : index
    %c0_8 = arith.constant 0 : index
    %c0_9 = arith.constant 0 : index
    %8 = vector.load %arg8[%c0_7, %c0_8, %c0_9] : memref<4x8x384xf32, #tpu.memory_space<vmem>>, vector<1x8x384xf32>
    %9 = vector.shape_cast %8 : vector<1x8x384xf32> to vector<8x384xf32>
    %10 = vector.shape_cast %7 : vector<8x384xf32> to vector<1x8x384xf32>
    tpu.vector_store %arg8[%c0_7, %c0_8, %c0_9], %10 {strides = array<i32>} : memref<4x8x384xf32, #tpu.memory_space<vmem>>, vector<1x8x384xf32>,
    %c1 = arith.constant 1 : index
    %c0_10 = arith.constant 0 : index
    %c0_11 = arith.constant 0 : index
    %11 = vector.load %arg2[%c1, %c0_10, %c0_11] : memref<4x8x16xbf16, #tpu.memory_space<vmem>>, vector<1x8x16xbf16>
    %12 = vector.shape_cast %11 : vector<1x8x16xbf16> to vector<8x16xbf16>
    %cst_12 = arith.constant dense<0.000000e+00> : vector<8x384xf32>
    %13 = tpu.matmul %12, %3, %cst_12 {dimension_numbers = #tpu.dot_dimension_numbers<[1], [0], [0], [1], [0, 0, 1, 1], [], []>} : vector<8x16xbf16>, vector<16x384xbf16>, vector<8x384xf32> -> vector<8x384xf32>
    %c1_13 = arith.constant 1 : index
    %c0_14 = arith.constant 0 : index
    %c0_15 = arith.constant 0 : index
    %14 = vector.load %arg8[%c1_13, %c0_14, %c0_15] : memref<4x8x384xf32, #tpu.memory_space<vmem>>, vector<1x8x384xf32>
    %15 = vector.shape_cast %14 : vector<1x8x384xf32> to vector<8x384xf32>
    %16 = vector.shape_cast %13 : vector<8x384xf32> to vector<1x8x384xf32>
    tpu.vector_store %arg8[%c1_13, %c0_14, %c0_15], %16 {strides = array<i32>} : memref<4x8x384xf32, #tpu.memory_space<vmem>>, vector<1x8x384xf32>,
    %c2 = arith.constant 2 : index
    %c0_16 = arith.constant 0 : index
    %c0_17 = arith.constant 0 : index
    %17 = vector.load %arg2[%c2, %c0_16, %c0_17] : memref<4x8x16xbf16, #tpu.memory_space<vmem>>, vector<1x8x16xbf16>
    %18 = vector.shape_cast %17 : vector<1x8x16xbf16> to vector<8x16xbf16>
    %cst_18 = arith.constant dense<0.000000e+00> : vector<8x384xf32>
    %19 = tpu.matmul %18, %3, %cst_18 {dimension_numbers = #tpu.dot_dimension_numbers<[1], [0], [0], [1], [0, 0, 1, 1], [], []>} : vector<8x16xbf16>, vector<16x384xbf16>, vector<8x384xf32> -> vector<8x384xf32>
    %c2_19 = arith.constant 2 : index
    %c0_20 = arith.constant 0 : index
    %c0_21 = arith.constant 0 : index
    %20 = vector.load %arg8[%c2_19, %c0_20, %c0_21] : memref<4x8x384xf32, #tpu.memory_space<vmem>>, vector<1x8x384xf32>
    %21 = vector.shape_cast %20 : vector<1x8x384xf32> to vector<8x384xf32>
    %22 = vector.shape_cast %19 : vector<8x384xf32> to vector<1x8x384xf32>
    tpu.vector_store %arg8[%c2_19, %c0_20, %c0_21], %22 {strides = array<i32>} : memref<4x8x384xf32, #tpu.memory_space<vmem>>, vector<1x8x384xf32>,
    %c3 = arith.constant 3 : index
    %c0_22 = arith.constant 0 : index
    %c0_23 = arith.constant 0 : index
    %23 = vector.load %arg2[%c3, %c0_22, %c0_23] : memref<4x8x16xbf16, #tpu.memory_space<vmem>>, vector<1x8x16xbf16>
    %24 = vector.shape_cast %23 : vector<1x8x16xbf16> to vector<8x16xbf16>
    %cst_24 = arith.constant dense<0.000000e+00> : vector<8x384xf32>
    %25 = tpu.matmul %24, %3, %cst_24 {dimension_numbers = #tpu.dot_dimension_numbers<[1], [0], [0], [1], [0, 0, 1, 1], [], []>} : vector<8x16xbf16>, vector<16x384xbf16>, vector<8x384xf32> -> vector<8x384xf32>
    %c3_25 = arith.constant 3 : index
    %c0_26 = arith.constant 0 : index
    %c0_27 = arith.constant 0 : index
    %26 = vector.load %arg8[%c3_25, %c0_26, %c0_27] : memref<4x8x384xf32, #tpu.memory_space<vmem>>, vector<1x8x384xf32>
    %27 = vector.shape_cast %26 : vector<1x8x384xf32> to vector<8x384xf32>
    %28 = vector.shape_cast %25 : vector<8x384xf32> to vector<1x8x384xf32>
    tpu.vector_store %arg8[%c3_25, %c0_26, %c0_27], %28 {strides = array<i32>} : memref<4x8x384xf32, #tpu.memory_space<vmem>>, vector<1x8x384xf32>,
    %c2_i32 = arith.constant 2 : i32
    %29 = arith.cmpi ne, %arg1, %c2_i32 : i32
    %30 = arith.extui %29 : i1 to i32
    %c0_i32_28 = arith.constant 0 : i32
    %31 = arith.cmpi ne, %30, %c0_i32_28 : i32
    scf.if %31 {
      %c0_33 = arith.constant 0 : index
      %c0_34 = arith.constant 0 : index
      %38 = vector.load %arg7[%c0_33, %c0_34] : memref<8x128xf32, #tpu.memory_space<vmem>>, vector<8x128xf32>
      %c0_i32_35 = arith.constant 0 : i32
      %39 = arith.index_cast %c0_i32_35 : i32 to index
      %c0_36 = arith.constant 0 : index
      %c0_37 = arith.constant 0 : index
      %40 = vector.load %arg8[%39, %c0_36, %c0_37] : memref<4x8x384xf32, #tpu.memory_space<vmem>>, vector<1x8x384xf32>
      %41 = vector.shape_cast %40 : vector<1x8x384xf32> to vector<8x384xf32>
      %42 = arith.truncf %38 : vector<8x128xf32> to vector<8x128xbf16>
      %cst_38 = arith.constant dense<0.000000e+00> : vector<8x384xf32>
      %43 = tpu.matmul %42, %4, %cst_38 {dimension_numbers = #tpu.dot_dimension_numbers<[1], [0], [0], [1], [0, 0, 1, 1], [], []>} : vector<8x128xbf16>, vector<128x384xbf16>, vector<8x384xf32> -> vector<8x384xf32>
      %44 = vector.extract_strided_slice %41 {offsets = [0, 0], sizes = [8, 128], strides = [1, 1]} : vector<8x384xf32> to vector<8x128xf32>
      %45 = vector.extract_strided_slice %43 {offsets = [0, 0], sizes = [8, 128], strides = [1, 1]} : vector<8x384xf32> to vector<8x128xf32>
      %46 = arith.addf %44, %45 : vector<8x128xf32>
      %47 = arith.negf %46 : vector<8x128xf32>
      %48 = math.exp %47 : vector<8x128xf32>
      %cst_39 = arith.constant 1.000000e+00 : f32
      %49 = vector.broadcast %cst_39 : f32 to vector<8x128xf32>
      %50 = arith.addf %49, %48 : vector<8x128xf32>
      %51 = arith.divf %49, %50 : vector<8x128xf32>
      %52 = vector.extract_strided_slice %41 {offsets = [0, 128], sizes = [8, 128], strides = [1, 1]} : vector<8x384xf32> to vector<8x128xf32>
      %53 = vector.extract_strided_slice %43 {offsets = [0, 128], sizes = [8, 128], strides = [1, 1]} : vector<8x384xf32> to vector<8x128xf32>
      %54 = arith.addf %52, %53 : vector<8x128xf32>
      %55 = arith.negf %54 : vector<8x128xf32>
      %56 = math.exp %55 : vector<8x128xf32>
      %cst_40 = arith.constant 1.000000e+00 : f32
      %57 = vector.broadcast %cst_40 : f32 to vector<8x128xf32>
      %58 = arith.addf %57, %56 : vector<8x128xf32>
      %59 = arith.divf %57, %58 : vector<8x128xf32>
      %60 = vector.extract_strided_slice %41 {offsets = [0, 256], sizes = [8, 128], strides = [1, 1]} : vector<8x384xf32> to vector<8x128xf32>
      %61 = vector.extract_strided_slice %43 {offsets = [0, 256], sizes = [8, 128], strides = [1, 1]} : vector<8x384xf32> to vector<8x128xf32>
      %62 = arith.mulf %51, %61 : vector<8x128xf32>
      %63 = arith.addf %60, %62 : vector<8x128xf32>
      %64 = math.tanh %63 : vector<8x128xf32>
      %65 = arith.subf %38, %64 : vector<8x128xf32>
      %66 = arith.mulf %59, %65 : vector<8x128xf32>
      %67 = arith.addf %64, %66 : vector<8x128xf32>
      %c1_i32 = arith.constant 1 : i32
      %68 = arith.index_cast %c1_i32 : i32 to index
      %c0_41 = arith.constant 0 : index
      %c0_42 = arith.constant 0 : index
      %69 = vector.load %arg8[%68, %c0_41, %c0_42] : memref<4x8x384xf32, #tpu.memory_space<vmem>>, vector<1x8x384xf32>
      %70 = vector.shape_cast %69 : vector<1x8x384xf32> to vector<8x384xf32>
      %71 = arith.truncf %67 : vector<8x128xf32> to vector<8x128xbf16>
      %cst_43 = arith.constant dense<0.000000e+00> : vector<8x384xf32>
      %72 = tpu.matmul %71, %4, %cst_43 {dimension_numbers = #tpu.dot_dimension_numbers<[1], [0], [0], [1], [0, 0, 1, 1], [], []>} : vector<8x128xbf16>, vector<128x384xbf16>, vector<8x384xf32> -> vector<8x384xf32>
      %73 = vector.extract_strided_slice %70 {offsets = [0, 0], sizes = [8, 128], strides = [1, 1]} : vector<8x384xf32> to vector<8x128xf32>
      %74 = vector.extract_strided_slice %72 {offsets = [0, 0], sizes = [8, 128], strides = [1, 1]} : vector<8x384xf32> to vector<8x128xf32>
      %75 = arith.addf %73, %74 : vector<8x128xf32>
      %76 = arith.negf %75 : vector<8x128xf32>
      %77 = math.exp %76 : vector<8x128xf32>
      %cst_44 = arith.constant 1.000000e+00 : f32
      %78 = vector.broadcast %cst_44 : f32 to vector<8x128xf32>
      %79 = arith.addf %78, %77 : vector<8x128xf32>
      %80 = arith.divf %78, %79 : vector<8x128xf32>
      %81 = vector.extract_strided_slice %70 {offsets = [0, 128], sizes = [8, 128], strides = [1, 1]} : vector<8x384xf32> to vector<8x128xf32>
      %82 = vector.extract_strided_slice %72 {offsets = [0, 128], sizes = [8, 128], strides = [1, 1]} : vector<8x384xf32> to vector<8x128xf32>
      %83 = arith.addf %81, %82 : vector<8x128xf32>
      %84 = arith.negf %83 : vector<8x128xf32>
      %85 = math.exp %84 : vector<8x128xf32>
      %cst_45 = arith.constant 1.000000e+00 : f32
      %86 = vector.broadcast %cst_45 : f32 to vector<8x128xf32>
      %87 = arith.addf %86, %85 : vector<8x128xf32>
      %88 = arith.divf %86, %87 : vector<8x128xf32>
      %89 = vector.extract_strided_slice %70 {offsets = [0, 256], sizes = [8, 128], strides = [1, 1]} : vector<8x384xf32> to vector<8x128xf32>
      %90 = vector.extract_strided_slice %72 {offsets = [0, 256], sizes = [8, 128], strides = [1, 1]} : vector<8x384xf32> to vector<8x128xf32>
      %91 = arith.mulf %80, %90 : vector<8x128xf32>
      %92 = arith.addf %89, %91 : vector<8x128xf32>
      %93 = math.tanh %92 : vector<8x128xf32>
      %94 = arith.subf %67, %93 : vector<8x128xf32>
      %95 = arith.mulf %88, %94 : vector<8x128xf32>
      %96 = arith.addf %93, %95 : vector<8x128xf32>
      %c2_i32_46 = arith.constant 2 : i32
      %97 = arith.index_cast %c2_i32_46 : i32 to index
      %c0_47 = arith.constant 0 : index
      %c0_48 = arith.constant 0 : index
      %98 = vector.load %arg8[%97, %c0_47, %c0_48] : memref<4x8x384xf32, #tpu.memory_space<vmem>>, vector<1x8x384xf32>
      %99 = vector.shape_cast %98 : vector<1x8x384xf32> to vector<8x384xf32>
      %100 = arith.truncf %96 : vector<8x128xf32> to vector<8x128xbf16>
      %cst_49 = arith.constant dense<0.000000e+00> : vector<8x384xf32>
      %101 = tpu.matmul %100, %4, %cst_49 {dimension_numbers = #tpu.dot_dimension_numbers<[1], [0], [0], [1], [0, 0, 1, 1], [], []>} : vector<8x128xbf16>, vector<128x384xbf16>, vector<8x384xf32> -> vector<8x384xf32>
      %102 = vector.extract_strided_slice %99 {offsets = [0, 0], sizes = [8, 128], strides = [1, 1]} : vector<8x384xf32> to vector<8x128xf32>
      %103 = vector.extract_strided_slice %101 {offsets = [0, 0], sizes = [8, 128], strides = [1, 1]} : vector<8x384xf32> to vector<8x128xf32>
      %104 = arith.addf %102, %103 : vector<8x128xf32>
      %105 = arith.negf %104 : vector<8x128xf32>
      %106 = math.exp %105 : vector<8x128xf32>
      %cst_50 = arith.constant 1.000000e+00 : f32
      %107 = vector.broadcast %cst_50 : f32 to vector<8x128xf32>
      %108 = arith.addf %107, %106 : vector<8x128xf32>
      %109 = arith.divf %107, %108 : vector<8x128xf32>
      %110 = vector.extract_strided_slice %99 {offsets = [0, 128], sizes = [8, 128], strides = [1, 1]} : vector<8x384xf32> to vector<8x128xf32>
      %111 = vector.extract_strided_slice %101 {offsets = [0, 128], sizes = [8, 128], strides = [1, 1]} : vector<8x384xf32> to vector<8x128xf32>
      %112 = arith.addf %110, %111 : vector<8x128xf32>
      %113 = arith.negf %112 : vector<8x128xf32>
      %114 = math.exp %113 : vector<8x128xf32>
      %cst_51 = arith.constant 1.000000e+00 : f32
      %115 = vector.broadcast %cst_51 : f32 to vector<8x128xf32>
      %116 = arith.addf %115, %114 : vector<8x128xf32>
      %117 = arith.divf %115, %116 : vector<8x128xf32>
      %118 = vector.extract_strided_slice %99 {offsets = [0, 256], sizes = [8, 128], strides = [1, 1]} : vector<8x384xf32> to vector<8x128xf32>
      %119 = vector.extract_strided_slice %101 {offsets = [0, 256], sizes = [8, 128], strides = [1, 1]} : vector<8x384xf32> to vector<8x128xf32>
      %120 = arith.mulf %109, %119 : vector<8x128xf32>
      %121 = arith.addf %118, %120 : vector<8x128xf32>
      %122 = math.tanh %121 : vector<8x128xf32>
      %123 = arith.subf %96, %122 : vector<8x128xf32>
      %124 = arith.mulf %117, %123 : vector<8x128xf32>
      %125 = arith.addf %122, %124 : vector<8x128xf32>
      %c3_i32 = arith.constant 3 : i32
      %126 = arith.index_cast %c3_i32 : i32 to index
      %c0_52 = arith.constant 0 : index
      %c0_53 = arith.constant 0 : index
      %127 = vector.load %arg8[%126, %c0_52, %c0_53] : memref<4x8x384xf32, #tpu.memory_space<vmem>>, vector<1x8x384xf32>
      %128 = vector.shape_cast %127 : vector<1x8x384xf32> to vector<8x384xf32>
      %129 = arith.truncf %125 : vector<8x128xf32> to vector<8x128xbf16>
      %cst_54 = arith.constant dense<0.000000e+00> : vector<8x384xf32>
      %130 = tpu.matmul %129, %4, %cst_54 {dimension_numbers = #tpu.dot_dimension_numbers<[1], [0], [0], [1], [0, 0, 1, 1], [], []>} : vector<8x128xbf16>, vector<128x384xbf16>, vector<8x384xf32> -> vector<8x384xf32>
      %131 = vector.extract_strided_slice %128 {offsets = [0, 0], sizes = [8, 128], strides = [1, 1]} : vector<8x384xf32> to vector<8x128xf32>
      %132 = vector.extract_strided_slice %130 {offsets = [0, 0], sizes = [8, 128], strides = [1, 1]} : vector<8x384xf32> to vector<8x128xf32>
      %133 = arith.addf %131, %132 : vector<8x128xf32>
      %134 = arith.negf %133 : vector<8x128xf32>
      %135 = math.exp %134 : vector<8x128xf32>
      %cst_55 = arith.constant 1.000000e+00 : f32
      %136 = vector.broadcast %cst_55 : f32 to vector<8x128xf32>
      %137 = arith.addf %136, %135 : vector<8x128xf32>
      %138 = arith.divf %136, %137 : vector<8x128xf32>
      %139 = vector.extract_strided_slice %128 {offsets = [0, 128], sizes = [8, 128], strides = [1, 1]} : vector<8x384xf32> to vector<8x128xf32>
      %140 = vector.extract_strided_slice %130 {offsets = [0, 128], sizes = [8, 128], strides = [1, 1]} : vector<8x384xf32> to vector<8x128xf32>
      %141 = arith.addf %139, %140 : vector<8x128xf32>
      %142 = arith.negf %141 : vector<8x128xf32>
      %143 = math.exp %142 : vector<8x128xf32>
      %cst_56 = arith.constant 1.000000e+00 : f32
      %144 = vector.broadcast %cst_56 : f32 to vector<8x128xf32>
      %145 = arith.addf %144, %143 : vector<8x128xf32>
      %146 = arith.divf %144, %145 : vector<8x128xf32>
      %147 = vector.extract_strided_slice %128 {offsets = [0, 256], sizes = [8, 128], strides = [1, 1]} : vector<8x384xf32> to vector<8x128xf32>
      %148 = vector.extract_strided_slice %130 {offsets = [0, 256], sizes = [8, 128], strides = [1, 1]} : vector<8x384xf32> to vector<8x128xf32>
      %149 = arith.mulf %138, %148 : vector<8x128xf32>
      %150 = arith.addf %147, %149 : vector<8x128xf32>
      %151 = math.tanh %150 : vector<8x128xf32>
      %152 = arith.subf %125, %151 : vector<8x128xf32>
      %153 = arith.mulf %146, %152 : vector<8x128xf32>
      %154 = arith.addf %151, %153 : vector<8x128xf32>
      %c4_i32 = arith.constant 4 : i32
      %c0_57 = arith.constant 0 : index
      %c0_58 = arith.constant 0 : index
      %155 = vector.load %arg7[%c0_57, %c0_58] : memref<8x128xf32, #tpu.memory_space<vmem>>, vector<8x128xf32>
      tpu.vector_store %arg7[%c0_57, %c0_58], %154 {strides = array<i32>} : memref<8x128xf32, #tpu.memory_space<vmem>>, vector<8x128xf32>,
    } else {
    }
    %c2_i32_29 = arith.constant 2 : i32
    %32 = arith.cmpi eq, %arg1, %c2_i32_29 : i32
    %33 = arith.extui %32 : i1 to i32
    %c0_i32_30 = arith.constant 0 : i32
    %34 = arith.cmpi ne, %33, %c0_i32_30 : i32
    scf.if %34 {
      %c0_33 = arith.constant 0 : index
      %c0_34 = arith.constant 0 : index
      %38 = vector.load %arg7[%c0_33, %c0_34] : memref<8x128xf32, #tpu.memory_space<vmem>>, vector<8x128xf32>
      %c0_i32_35 = arith.constant 0 : i32
      %39 = arith.index_cast %c0_i32_35 : i32 to index
      %c0_36 = arith.constant 0 : index
      %c0_37 = arith.constant 0 : index
      %40 = vector.load %arg8[%39, %c0_36, %c0_37] : memref<4x8x384xf32, #tpu.memory_space<vmem>>, vector<1x8x384xf32>
      %41 = vector.shape_cast %40 : vector<1x8x384xf32> to vector<8x384xf32>
      %42 = arith.truncf %38 : vector<8x128xf32> to vector<8x128xbf16>
      %cst_38 = arith.constant dense<0.000000e+00> : vector<8x384xf32>
      %43 = tpu.matmul %42, %4, %cst_38 {dimension_numbers = #tpu.dot_dimension_numbers<[1], [0], [0], [1], [0, 0, 1, 1], [], []>} : vector<8x128xbf16>, vector<128x384xbf16>, vector<8x384xf32> -> vector<8x384xf32>
      %44 = vector.extract_strided_slice %41 {offsets = [0, 0], sizes = [8, 128], strides = [1, 1]} : vector<8x384xf32> to vector<8x128xf32>
      %45 = vector.extract_strided_slice %43 {offsets = [0, 0], sizes = [8, 128], strides = [1, 1]} : vector<8x384xf32> to vector<8x128xf32>
      %46 = arith.addf %44, %45 : vector<8x128xf32>
      %47 = arith.negf %46 : vector<8x128xf32>
      %48 = math.exp %47 : vector<8x128xf32>
      %cst_39 = arith.constant 1.000000e+00 : f32
      %49 = vector.broadcast %cst_39 : f32 to vector<8x128xf32>
      %50 = arith.addf %49, %48 : vector<8x128xf32>
      %51 = arith.divf %49, %50 : vector<8x128xf32>
      %52 = vector.extract_strided_slice %41 {offsets = [0, 128], sizes = [8, 128], strides = [1, 1]} : vector<8x384xf32> to vector<8x128xf32>
      %53 = vector.extract_strided_slice %43 {offsets = [0, 128], sizes = [8, 128], strides = [1, 1]} : vector<8x384xf32> to vector<8x128xf32>
      %54 = arith.addf %52, %53 : vector<8x128xf32>
      %55 = arith.negf %54 : vector<8x128xf32>
      %56 = math.exp %55 : vector<8x128xf32>
      %cst_40 = arith.constant 1.000000e+00 : f32
      %57 = vector.broadcast %cst_40 : f32 to vector<8x128xf32>
      %58 = arith.addf %57, %56 : vector<8x128xf32>
      %59 = arith.divf %57, %58 : vector<8x128xf32>
      %60 = vector.extract_strided_slice %41 {offsets = [0, 256], sizes = [8, 128], strides = [1, 1]} : vector<8x384xf32> to vector<8x128xf32>
      %61 = vector.extract_strided_slice %43 {offsets = [0, 256], sizes = [8, 128], strides = [1, 1]} : vector<8x384xf32> to vector<8x128xf32>
      %62 = arith.mulf %51, %61 : vector<8x128xf32>
      %63 = arith.addf %60, %62 : vector<8x128xf32>
      %64 = math.tanh %63 : vector<8x128xf32>
      %65 = arith.subf %38, %64 : vector<8x128xf32>
      %66 = arith.mulf %59, %65 : vector<8x128xf32>
      %67 = arith.addf %64, %66 : vector<8x128xf32>
      %c1_i32 = arith.constant 1 : i32
      %68 = arith.index_cast %c1_i32 : i32 to index
      %c0_41 = arith.constant 0 : index
      %c0_42 = arith.constant 0 : index
      %69 = vector.load %arg8[%68, %c0_41, %c0_42] : memref<4x8x384xf32, #tpu.memory_space<vmem>>, vector<1x8x384xf32>
      %70 = vector.shape_cast %69 : vector<1x8x384xf32> to vector<8x384xf32>
      %71 = arith.truncf %67 : vector<8x128xf32> to vector<8x128xbf16>
      %cst_43 = arith.constant dense<0.000000e+00> : vector<8x384xf32>
      %72 = tpu.matmul %71, %4, %cst_43 {dimension_numbers = #tpu.dot_dimension_numbers<[1], [0], [0], [1], [0, 0, 1, 1], [], []>} : vector<8x128xbf16>, vector<128x384xbf16>, vector<8x384xf32> -> vector<8x384xf32>
      %73 = vector.extract_strided_slice %70 {offsets = [0, 0], sizes = [8, 128], strides = [1, 1]} : vector<8x384xf32> to vector<8x128xf32>
      %74 = vector.extract_strided_slice %72 {offsets = [0, 0], sizes = [8, 128], strides = [1, 1]} : vector<8x384xf32> to vector<8x128xf32>
      %75 = arith.addf %73, %74 : vector<8x128xf32>
      %76 = arith.negf %75 : vector<8x128xf32>
      %77 = math.exp %76 : vector<8x128xf32>
      %cst_44 = arith.constant 1.000000e+00 : f32
      %78 = vector.broadcast %cst_44 : f32 to vector<8x128xf32>
      %79 = arith.addf %78, %77 : vector<8x128xf32>
      %80 = arith.divf %78, %79 : vector<8x128xf32>
      %81 = vector.extract_strided_slice %70 {offsets = [0, 128], sizes = [8, 128], strides = [1, 1]} : vector<8x384xf32> to vector<8x128xf32>
      %82 = vector.extract_strided_slice %72 {offsets = [0, 128], sizes = [8, 128], strides = [1, 1]} : vector<8x384xf32> to vector<8x128xf32>
      %83 = arith.addf %81, %82 : vector<8x128xf32>
      %84 = arith.negf %83 : vector<8x128xf32>
      %85 = math.exp %84 : vector<8x128xf32>
      %cst_45 = arith.constant 1.000000e+00 : f32
      %86 = vector.broadcast %cst_45 : f32 to vector<8x128xf32>
      %87 = arith.addf %86, %85 : vector<8x128xf32>
      %88 = arith.divf %86, %87 : vector<8x128xf32>
      %89 = vector.extract_strided_slice %70 {offsets = [0, 256], sizes = [8, 128], strides = [1, 1]} : vector<8x384xf32> to vector<8x128xf32>
      %90 = vector.extract_strided_slice %72 {offsets = [0, 256], sizes = [8, 128], strides = [1, 1]} : vector<8x384xf32> to vector<8x128xf32>
      %91 = arith.mulf %80, %90 : vector<8x128xf32>
      %92 = arith.addf %89, %91 : vector<8x128xf32>
      %93 = math.tanh %92 : vector<8x128xf32>
      %94 = arith.subf %67, %93 : vector<8x128xf32>
      %95 = arith.mulf %88, %94 : vector<8x128xf32>
      %96 = arith.addf %93, %95 : vector<8x128xf32>
      %c2_i32_46 = arith.constant 2 : i32
      %c0_47 = arith.constant 0 : index
      %c0_48 = arith.constant 0 : index
      %97 = vector.load %arg7[%c0_47, %c0_48] : memref<8x128xf32, #tpu.memory_space<vmem>>, vector<8x128xf32>
      tpu.vector_store %arg7[%c0_47, %c0_48], %96 {strides = array<i32>} : memref<8x128xf32, #tpu.memory_space<vmem>>, vector<8x128xf32>,
    } else {
    }
    %c2_i32_31 = arith.constant 2 : i32
    %35 = arith.cmpi eq, %arg1, %c2_i32_31 : i32
    %36 = arith.extui %35 : i1 to i32
    %c0_i32_32 = arith.constant 0 : i32
    %37 = arith.cmpi ne, %36, %c0_i32_32 : i32
    scf.if %37 {
      %c0_33 = arith.constant 0 : index
      %c0_34 = arith.constant 0 : index
      %38 = vector.load %arg7[%c0_33, %c0_34] : memref<8x128xf32, #tpu.memory_space<vmem>>, vector<8x128xf32>
      %39 = arith.truncf %38 : vector<8x128xf32> to vector<8x128xbf16>
      %c0_35 = arith.constant 0 : index
      %c0_36 = arith.constant 0 : index
      %40 = vector.load %arg5[%c0_35, %c0_36] : memref<128x8xbf16, #tpu.memory_space<vmem>>, vector<128x8xbf16>
      %cst_37 = arith.constant dense<0.000000e+00> : vector<8x8xf32>
      %41 = tpu.matmul %39, %40, %cst_37 {dimension_numbers = #tpu.dot_dimension_numbers<[1], [0], [0], [1], [0, 0, 1, 1], [], []>} : vector<8x128xbf16>, vector<128x8xbf16>, vector<8x8xf32> -> vector<8x8xf32>
      %c0_38 = arith.constant 0 : index
      %c0_39 = arith.constant 0 : index
      %42 = vector.load %arg6[%c0_38, %c0_39] : memref<8x8xf32, #tpu.memory_space<vmem>>, vector<8x8xf32>
      tpu.vector_store %arg6[%c0_38, %c0_39], %41 {strides = array<i32>} : memref<8x8xf32, #tpu.memory_space<vmem>>, vector<8x8xf32>,
    } else {
    }
    return
  }
  func.func @transform_0(%arg0: i32, %arg1: i32) -> (i32, i32, i32) {
    %c0_i32 = arith.constant 0 : i32
    %c0_i32_0 = arith.constant 0 : i32
    return %arg1, %arg0, %c0_i32 : i32, i32, i32
  }
  func.func @transform_1(%arg0: i32, %arg1: i32) -> (i32, i32) {
    %c0_i32 = arith.constant 0 : i32
    %c0_i32_0 = arith.constant 0 : i32
    %c0_i32_1 = arith.constant 0 : i32
    return %c0_i32, %c0_i32_0 : i32, i32
  }
  func.func @transform_2(%arg0: i32, %arg1: i32) -> (i32, i32) {
    %c0_i32 = arith.constant 0 : i32
    %c0_i32_0 = arith.constant 0 : i32
    %c0_i32_1 = arith.constant 0 : i32
    return %c0_i32, %c0_i32_0 : i32, i32
  }
  func.func @transform_3(%arg0: i32, %arg1: i32) -> (i32, i32) {
    %c0_i32 = arith.constant 0 : i32
    %c0_i32_0 = arith.constant 0 : i32
    %c0_i32_1 = arith.constant 0 : i32
    return %c0_i32, %c0_i32_0 : i32, i32
  }
  func.func @transform_4(%arg0: i32, %arg1: i32) -> (i32, i32) {
    %c0_i32 = arith.constant 0 : i32
    %c0_i32_0 = arith.constant 0 : i32
    return %arg0, %c0_i32 : i32, i32
  }
}

</mosaic_0001>

<llo_original>
// kernel: tpu_custom_call.1
$region0: #{tpu_custom_call.1}
  #allocation0 [shape = 'u32[]', space=smem, size = 0x4, offset = 0x4, fixed_abs, tag = 'smem constant byte address 0x4 - core index']
  #allocation1 [shape = 'u32[144,128]{1,0:T(1,128)}', space=vmem, size = 0x12000, scoped, tag = 'internal scratch']
  #allocation2 [shape = 'f32[8,128]{1,0:T(8,128)}', space=vmem, size = 0x1000, scoped, tag = 'scratch operand']
  #allocation3 [shape = 'f32[4,8,384]{2,1,0:T(8,128)}', space=vmem, size = 0xc000, scoped, tag = 'scratch operand']
  %s0 = inlined_call_operand.vmem [shape: bf16[12,8,16], index: 0, kind: input, shape index: {}]
  %s1 = inlined_call_operand.hbm [shape: bf16[16,384], index: 1, kind: input, shape index: {}]
  %s2 = inlined_call_operand.hbm [shape: bf16[128,384], index: 2, kind: input, shape index: {}]
  %s3 = inlined_call_operand.vmem [shape: bf16[128,8], index: 3, kind: input, shape index: {}]
  %s4 = inlined_call_operand.hbm [shape: f32[8,8], index: 4, kind: output, shape index: {}]
  %s5 = sld [smem:[#allocation0]]
  $region69: #{tpu_custom_call.1} parent=0
    _
  %s7 = ssub.s32 1, %s5
  %s8 = scalar_select 0, %s7, %s5
  $region1: #{tpu_custom_call.1} parent=0
    #allocation4 [shape = 'u8[12288]{0}', space=vmem, size = 0x3000, scoped, tag = 'input window, operand 1, single buffered']
    #allocation5 [shape = 's32[2]{0}', space=sflag, size = 0x8, scoped, tag = 'scoped memory for tpu_custom_call.1']
    #allocation6 [shape = 's32[2]{0}', space=sflag, size = 0x8, scoped, tag = 'scoped memory for tpu_custom_call.1']
    #allocation7 [shape = 'u8[98304]{0}', space=vmem, size = 0x18000, scoped, tag = 'input window, operand 2, single buffered']
    #allocation8 [shape = 's32[1]{0}', space=sflag, size = 0x4, scoped, tag = 'scoped memory for tpu_custom_call.1']
    #allocation9 [shape = 'u8[4096]{0}', space=vmem, size = 0x1000, scoped, tag = 'output window, operand 0, single buffered']
    %9 = vsyncpa [#allocation5], 0
    %10 = vsyncpa [#allocation8], 0
    %11 = vsyncpa [#allocation6], 0
    loop: start=0, step=1, limit=5
    $region2: #{tpu_custom_call.1} parent=1 // loop_pre_header
      _
    $region3: #{tpu_custom_call.1} parent=1 // loop_header
      %s13 = sphi 0, %s17
      %p14 = scmp.ge.s32.totalorder %s13, 5
      %s20 = sphi 0, %s32
      %s21 = sphi 0, %s28
      %s22 = sphi 0, %s20
      %s23 = sphi 0, %s21
      %s24 = sphi 0, %s22
      %s25 = sphi 0, %s23
      %s37 = sphi 0, %s39
      %s40 = sphi 0, %s37
      %s41 = sphi 0, %s40
      %s57 = sphi 0, %s41
      %s61 = sphi 0, %s61
      %s63 = sphi 0, %s61
      %s64 = sphi 0, %s63
      %s78 = sphi 0, %s64
      %s82 = sphi 0, %s82
      %s84 = sphi 0, %s82
      %s85 = sphi 0, %s84
      %s99 = sphi 0, %s85
      %s103 = sphi 0, %s103
      %s105 = sphi 0, %s103
      %s106 = sphi 0, %s105
      %s120 = sphi 0, %s106
      %s126 = sphi 0, %s128
      %s129 = sphi 0, %s126
      %s130 = sphi 0, %s129
      %s146 = sphi 0, %s130
    $region4: #{tpu_custom_call.1} parent=1 // loop_header_branch
      %16 = sbr.rel (%p14) target = $region8
    $region5: #{tpu_custom_call.1} parent=1 // loop_body
      %s18 = ssub.s32 %s13, 1
      %s19 = ssub.s32 %s13, 2
      %s26 = sadd.s32 1, %s21
      %p27 = scmp.ge.s32.totalorder %s26, 3
      %s28 = scalar_select %p27, 0, %s26
      %s29 = sadd.s32 1, %s20
      %s30 = scalar_select %p27, %s29, %s20
      %p31 = scmp.ge.s32.totalorder %s30, 1
      %s32 = scalar_select %p31, 0, %s30
      %s33 = ssub.s32 %s21, %s28
      %s34 = ssub.s32 %s20, %s32
      %s35 = sor.u32 %s33, %s34
      %p36 = scmp.eq.s32.totalorder %s35, 0
      %s38 = sadd.s32 %s37, 1
      %s39 = scalar_select %p36, %s37, %s38
      %p42 = pneg %p36
      %p43 = scmp.eq.s32.totalorder %s13, 2
      %p44 = por %p42, %p43
      %p45 = scmp.ne.s32.totalorder %s37, %s40
      %p46 = scmp.eq.s32.totalorder %s13, 0
      %p47 = por %p45, %p46
      %p48 = scmp.ne.s32.totalorder %s37, %s40
      %p49 = scmp.eq.s32.totalorder %s18, 2
      %p50 = por %p48, %p49
      %p51 = scmp.ne.s32.totalorder %s40, %s41
      %p52 = scmp.eq.s32.totalorder %s18, 0
      %p53 = por %p51, %p52
      %p54 = scmp.ne.s32.totalorder %s40, %s41
      %p55 = scmp.eq.s32.totalorder %s19, 2
      %p56 = por %p54, %p55
      %p58 = scmp.ne.s32.totalorder %s41, %s57
      %p59 = scmp.eq.s32.totalorder %s19, 0
      %p60 = por %p58, %p59
      %s62 = sadd.s32 %s61, 1
      %p65 = scmp.eq.s32.totalorder %s13, 2
      %p66 = scmp.ne.s32.totalorder %s61, %s63
      %p67 = scmp.eq.s32.totalorder %s13, 0
      %p68 = por %p66, %p67
      %p69 = scmp.ne.s32.totalorder %s61, %s63
      %p70 = scmp.eq.s32.totalorder %s18, 2
      %p71 = por %p69, %p70
      %p72 = scmp.ne.s32.totalorder %s63, %s64
      %p73 = scmp.eq.s32.totalorder %s18, 0
      %p74 = por %p72, %p73
      %p75 = scmp.ne.s32.totalorder %s63, %s64
      %p76 = scmp.eq.s32.totalorder %s19, 2
      %p77 = por %p75, %p76
      %p79 = scmp.ne.s32.totalorder %s64, %s78
      %p80 = scmp.eq.s32.totalorder %s19, 0
      %p81 = por %p79, %p80
      %s83 = sadd.s32 %s82, 1
      %p86 = scmp.eq.s32.totalorder %s13, 2
      %p87 = scmp.ne.s32.totalorder %s82, %s84
      %p88 = scmp.eq.s32.totalorder %s13, 0
      %p89 = por %p87, %p88
      %p90 = scmp.ne.s32.totalorder %s82, %s84
      %p91 = scmp.eq.s32.totalorder %s18, 2
      %p92 = por %p90, %p91
      %p93 = scmp.ne.s32.totalorder %s84, %s85
      %p94 = scmp.eq.s32.totalorder %s18, 0
      %p95 = por %p93, %p94
      %p96 = scmp.ne.s32.totalorder %s84, %s85
      %p97 = scmp.eq.s32.totalorder %s19, 2
      %p98 = por %p96, %p97
      %p100 = scmp.ne.s32.totalorder %s85, %s99
      %p101 = scmp.eq.s32.totalorder %s19, 0
      %p102 = por %p100, %p101
      %s104 = sadd.s32 %s103, 1
      %p107 = scmp.eq.s32.totalorder %s13, 2
      %p108 = scmp.ne.s32.totalorder %s103, %s105
      %p109 = scmp.eq.s32.totalorder %s13, 0
      %p110 = por %p108, %p109
      %p111 = scmp.ne.s32.totalorder %s103, %s105
      %p112 = scmp.eq.s32.totalorder %s18, 2
      %p113 = por %p111, %p112
      %p114 = scmp.ne.s32.totalorder %s105, %s106
      %p115 = scmp.eq.s32.totalorder %s18, 0
      %p116 = por %p114, %p115
      %p117 = scmp.ne.s32.totalorder %s105, %s106
      %p118 = scmp.eq.s32.totalorder %s19, 2
      %p119 = por %p117, %p118
      %p121 = scmp.ne.s32.totalorder %s106, %s120
      %p122 = scmp.eq.s32.totalorder %s19, 0
      %p123 = por %p121, %p122
      %s124 = ssub.s32 %s20, %s32
      %p125 = scmp.eq.s32.totalorder %s124, 0
      %s127 = sadd.s32 %s126, 1
      %s128 = scalar_select %p125, %s126, %s127
      %p131 = pneg %p125
      %p132 = scmp.eq.s32.totalorder %s13, 2
      %p133 = por %p131, %p132
      %p134 = scmp.ne.s32.totalorder %s126, %s129
      %p135 = scmp.eq.s32.totalorder %s13, 0
      %p136 = por %p134, %p135
      %p137 = scmp.ne.s32.totalorder %s126, %s129
      %p138 = scmp.eq.s32.totalorder %s18, 2
      %p139 = por %p137, %p138
      %p140 = scmp.ne.s32.totalorder %s129, %s130
      %p141 = scmp.eq.s32.totalorder %s18, 0
      %p142 = por %p140, %p141
      %p143 = scmp.ne.s32.totalorder %s129, %s130
      %p144 = scmp.eq.s32.totalorder %s19, 2
      %p145 = por %p143, %p144
      %p147 = scmp.ne.s32.totalorder %s130, %s146
      %p148 = scmp.eq.s32.totalorder %s19, 0
      %p149 = por %p147, %p148
      %p150 = scmp.le.s32.totalorder 1, %s13
      %p151 = scmp.lt.s32.totalorder %s13, 4
      %p152 = pnand %p150, %p151
      %p153 = pneg %p152
      // Predicated region
      $region9: #{tpu_custom_call.1} parent=5 // pred_check
        _
      $region10: #{tpu_custom_call.1} parent=5 // pred_check_branch
        %155 = sbr.rel (%p152) target = $region12
      $region11: #{tpu_custom_call.1} parent=5 // pred_region
        %s156 = ssub.s32 %s13, 1
        // Predicated region
        $region13: #{tpu_custom_call.1} parent=11 // pred_check
          %p157 = pneg %p74
        $region14: #{tpu_custom_call.1} parent=11 // pred_check_branch
          %159 = sbr.rel (%p157) target = $region16
        $region15: #{tpu_custom_call.1} parent=11 // pred_region
          %s161 = ssub.s32 384, 384
          %162 = vsyncadd [#allocation5], %s161
          %s163 = sshll.u32 [#allocation4], 4
          %s164 = int_to_ptr.vmem [resolvable:$true] %s163
          %169 = dma.hbm_to_vmem [thread:$0]  %s1, 384, %s164, [#allocation5], 192, 192, 12
        $region16: #{tpu_custom_call.1} parent=11 // pred_fallthru
          _
        // Predicated region
        $region17: #{tpu_custom_call.1} parent=11 // pred_check
          %p170 = pneg %p95
        $region18: #{tpu_custom_call.1} parent=11 // pred_check_branch
          %172 = sbr.rel (%p170) target = $region20
        $region19: #{tpu_custom_call.1} parent=11 // pred_region
          %s174 = ssub.s32 3072, 3072
          %175 = vsyncadd [#allocation8], %s174
          %s176 = sshll.u32 [#allocation7], 4
          %s177 = int_to_ptr.vmem [resolvable:$true] %s176
          %182 = dma.hbm_to_vmem [thread:$0]  %s2, 3072, %s177, [#allocation8], 192, 192, 12
        $region20: #{tpu_custom_call.1} parent=11 // pred_fallthru
          _
        // Predicated region
        $region21: #{tpu_custom_call.1} parent=11 // pred_check
          %p183 = pneg %p116
        $region22: #{tpu_custom_call.1} parent=11 // pred_check_branch
          %185 = sbr.rel (%p183) target = $region24
        $region23: #{tpu_custom_call.1} parent=11 // pred_region
          _
        $region24: #{tpu_custom_call.1} parent=11 // pred_fallthru
          _
      $region12: #{tpu_custom_call.1} parent=5 // pred_fallthru
        _
      %p186 = scmp.lt.s32.totalorder %s13, 3
      // Predicated region
      $region25: #{tpu_custom_call.1} parent=5 // pred_check
        %p187 = pneg %p186
      $region26: #{tpu_custom_call.1} parent=5 // pred_check_branch
        %189 = sbr.rel (%p187) target = $region28
      $region27: #{tpu_custom_call.1} parent=5 // pred_region
        // Predicated region
        $region29: #{tpu_custom_call.1} parent=27 // pred_check
          %p190 = pneg %p47
        $region30: #{tpu_custom_call.1} parent=27 // pred_check_branch
          %192 = sbr.rel (%p190) target = $region32
        $region31: #{tpu_custom_call.1} parent=27 // pred_region
          %s193 = smul.u32 4, %s21
          %p194 = scmp.lt.s32.totalorder %s193, 11
          %s195 = scalar_select %p194, %s193, 11
          %p196 = scmp.lt.s32.totalorder %s20, 0
          %s197 = scalar_select %p196, %s20, 0
          %s198 = sadd.s32 %s197, %s195
          %s199 = smul.addr %s198, 4
          %s200 = scalar_lea.vmem %s0, %s199
          %s201 = smul.u32 4, %s21
        $region32: #{tpu_custom_call.1} parent=27 // pred_fallthru
          _
      $region28: #{tpu_custom_call.1} parent=5 // pred_fallthru
        _
      %p202 = scmp.le.s32.totalorder 1, %s13
      %p203 = scmp.lt.s32.totalorder %s13, 4
      %p204 = pnand %p202, %p203
      %p205 = pneg %p204
      // Predicated region
      $region33: #{tpu_custom_call.1} parent=5 // pred_check
        _
      $region34: #{tpu_custom_call.1} parent=5 // pred_check_branch
        %207 = sbr.rel (%p204) target = $region36
      $region35: #{tpu_custom_call.1} parent=5 // pred_region
        %s208 = ssub.s32 %s13, 1
        // Predicated region
        $region37: #{tpu_custom_call.1} parent=35 // pred_check
          %p209 = pneg %p74
        $region38: #{tpu_custom_call.1} parent=35 // pred_check_branch
          %211 = sbr.rel (%p209) target = $region40
        $region39: #{tpu_custom_call.1} parent=35 // pred_region
          %212 = dma.done [#allocation5], 384
        $region40: #{tpu_custom_call.1} parent=35 // pred_fallthru
          _
        // Predicated region
        $region41: #{tpu_custom_call.1} parent=35 // pred_check
          %p213 = pneg %p95
        $region42: #{tpu_custom_call.1} parent=35 // pred_check_branch
          %215 = sbr.rel (%p213) target = $region44
        $region43: #{tpu_custom_call.1} parent=35 // pred_region
          %216 = dma.done [#allocation8], 3072
        $region44: #{tpu_custom_call.1} parent=35 // pred_fallthru
          _
        %s217 = smul.u32 4, %s23
        %p218 = scmp.lt.s32.totalorder %s217, 11
        %s219 = scalar_select %p218, %s217, 11
        %p220 = scmp.lt.s32.totalorder %s22, 0
        %s221 = scalar_select %p220, %s22, 0
        %s222 = sadd.s32 %s221, %s219
        %s223 = smul.addr %s222, 4
        %s224 = scalar_lea.vmem %s0, %s223
        %p225 = pneg %p53
        %p226 = pneg %p50
        %p227 = pneg %p74
        %p228 = pneg %p71
        %p229 = pneg %p95
        %p230 = pneg %p92
        %p231 = pneg %p116
        %p232 = pneg %p113
        %p233 = pneg %p142
        %p234 = pneg %p139
        %s235 = smul.u32 4, %s23
        %p236 = scmp.lt.s32.totalorder %s235, 11
        %s237 = scalar_select %p236, %s235, 11
        %p238 = scmp.lt.s32.totalorder %s22, 0
        %s239 = scalar_select %p238, %s22, 0
        %s240 = sadd.s32 %s239, %s237
        %s241 = smul.addr %s240, 4
        %s242 = scalar_lea.vmem %s0, %s241
        %s243 = smul.u32 4, %s23
        %p245 = scmp.eq.s32.totalorder %s23, 0
        // Predicated region
        $region45: #{tpu_custom_call.1} parent=35 // pred_check
          %p246 = pneg %p245
        $region46: #{tpu_custom_call.1} parent=35 // pred_check_branch
          %248 = sbr.rel (%p246) target = $region48
        $region47: #{tpu_custom_call.1} parent=35 // pred_region
          %249 = vst [vmem:[#allocation2] sm:$0xff] 0.0
        $region48: #{tpu_custom_call.1} parent=35 // pred_fallthru
          _
        %v250 = vld [vmem:[#allocation4] sm:$0xff]
        %v251 = vld [vmem:[#allocation4 + $0x8] sm:$0xf]
        %v252 = vld [vmem:[#allocation4 + $0xc] sm:$0xff]
        %v253 = vld [vmem:[#allocation4 + $0x14] sm:$0xf]
        %v254 = vld [vmem:[#allocation7] sm:$0xff]
        %v255 = vld [vmem:[#allocation7 + $0x8] sm:$0xf]
        %v256 = vld [vmem:[#allocation7 + $0xc] sm:$0xff]
        %v257 = vld [vmem:[#allocation7 + $0x14] sm:$0xf]
        %v258 = vld [vmem:[#allocation7 + $0x18] sm:$0xff]
        %v259 = vld [vmem:[#allocation7 + $0x20] sm:$0xf]
        %v260 = vld [vmem:[#allocation7 + $0x24] sm:$0xff]
        %v261 = vld [vmem:[#allocation7 + $0x2c] sm:$0xf]
        %v262 = vld [vmem:[#allocation7 + $0x30] sm:$0xff]
        %v263 = vld [vmem:[#allocation7 + $0x38] sm:$0xf]
        %v264 = vld [vmem:[#allocation7 + $0x3c] sm:$0xff]
        %v265 = vld [vmem:[#allocation7 + $0x44] sm:$0xf]
        %v266 = vld [vmem:[#allocation7 + $0x48] sm:$0xff]
        %v267 = vld [vmem:[#allocation7 + $0x50] sm:$0xf]
        %v268 = vld [vmem:[#allocation7 + $0x54] sm:$0xff]
        %v269 = vld [vmem:[#allocation7 + $0x5c] sm:$0xf]
        %v270 = vld [vmem:[#allocation7 + $0x60] sm:$0xff]
        %v271 = vld [vmem:[#allocation7 + $0x68] sm:$0xf]
        %v272 = vld [vmem:[#allocation7 + $0x6c] sm:$0xff]
        %v273 = vld [vmem:[#allocation7 + $0x74] sm:$0xf]
        %v274 = vld [vmem:[#allocation7 + $0x78] sm:$0xff]
        %v275 = vld [vmem:[#allocation7 + $0x80] sm:$0xf]
        %v276 = vld [vmem:[#allocation7 + $0x84] sm:$0xff]
        %v277 = vld [vmem:[#allocation7 + $0x8c] sm:$0xf]
        %v278 = vld [vmem:[#allocation7 + $0x90] sm:$0xff]
        %v279 = vld [vmem:[#allocation7 + $0x98] sm:$0xf]
        %v280 = vld [vmem:[#allocation7 + $0x9c] sm:$0xff]
        %v281 = vld [vmem:[#allocation7 + $0xa4] sm:$0xf]
        %v282 = vld [vmem:[#allocation7 + $0xa8] sm:$0xff]
        %v283 = vld [vmem:[#allocation7 + $0xb0] sm:$0xf]
        %v284 = vld [vmem:[#allocation7 + $0xb4] sm:$0xff]
        %v285 = vld [vmem:[#allocation7 + $0xbc] sm:$0xf]
        %v286 = vld [vmem:[%s242] sm:$0xf]
        %v291 = vunpack.c.l.b16 %v250
        %v292 = vunpack.c.h.b16 %v250
        %v293 = vunpack.c.l.b16 %v251
        %v294 = vunpack.c.l.b16 %v252
        %v295 = vunpack.c.h.b16 %v252
        %v296 = vunpack.c.l.b16 %v253
        %v297 = vpack.c.b16 %v294, %v291
        %v298 = vpack.c.b16 %v295, %v292
        %v299 = vpack.c.b16 %v296, %v293
        %vm303 = vcmask 130048
        %v305 = vsel %vm303, %v286, 0
        %307 = vmatprep.subr.bf16.mxu0 0
        %308 = vmatpush1.bf16.msra.mxu0 0
        %309 = vmatprep.subr.bf16.mxu0 0
        %310 = vmatpush1.bf16.msra.mxu0 0
        %311 = vmatprep.subr.bf16.mxu0 0
        %312 = vmatpush1.bf16.msra.mxu0 0
        %313 = vmatprep.subr.bf16.mxu0 0
        %314 = vmatpush1.bf16.msra.mxu0 0
        %315 = vmatprep.subr.bf16.mxu0 0
        %316 = vmatpush1.bf16.msra.mxu0 0
        %317 = vmatprep.subr.bf16.mxu0 0
        %318 = vmatpush1.bf16.msra.mxu0 0
        %319 = vmatprep.subr.bf16.mxu0 0
        %320 = vmatpush1.bf16.msra.mxu0 0
        %321 = vmatprep.subr.bf16.mxu0 %v298
        %322 = vmatpush1.bf16.msra.mxu0 %v297
        %323 = vmatprep.subr.bf16.mxu0 0
        %324 = vmatpush2.bf16.msra.mxu0 0
        %325 = vmatprep.subr.bf16.mxu0 0
        %326 = vmatpush2.bf16.msra.mxu0 0
        %327 = vmatprep.subr.bf16.mxu0 0
        %328 = vmatpush2.bf16.msra.mxu0 0
        %329 = vmatprep.subr.bf16.mxu0 0
        %330 = vmatpush2.bf16.msra.mxu0 0
        %331 = vmatprep.subr.bf16.mxu0 0
        %332 = vmatpush2.bf16.msra.mxu0 0
        %333 = vmatprep.subr.bf16.mxu0 0
        %334 = vmatpush2.bf16.msra.mxu0 0
        %335 = vmatprep.subr.bf16.mxu0 0
        %336 = vmatpush2.bf16.msra.mxu0 0
        %337 = vmatprep.subr.bf16.mxu0 0
        %338 = vmatpush2.bf16.msra.mxu0 0
        %339 = vmatprep.mubr.bf16.mxu0 0
        %340 = vmatmul.mubr.bf16.gmra.mxu0 %v305
        %v341 = vpop.f32.mrf.mxu0
        %v342 = vadd.f32 0.0, %v341
        %v343 = vpop.f32.mrf.mxu0
        %v344 = vadd.f32 0.0, %v343
        %v345 = vpop.f32.mrf.mxu0
        %v346 = vpop.f32.mrf.mxu0
        %347 = vdwg.mxu0
        %348 = vmatprep.subr.bf16.mxu0 0
        %349 = vmatpush1.bf16.msra.mxu0 0
        %350 = vmatprep.subr.bf16.mxu0 0
        %351 = vmatpush1.bf16.msra.mxu0 0
        %352 = vmatprep.subr.bf16.mxu0 0
        %353 = vmatpush1.bf16.msra.mxu0 0
        %354 = vmatprep.subr.bf16.mxu0 0
        %355 = vmatpush1.bf16.msra.mxu0 0
        %356 = vmatprep.subr.bf16.mxu0 0
        %357 = vmatpush1.bf16.msra.mxu0 0
        %358 = vmatprep.subr.bf16.mxu0 0
        %359 = vmatpush1.bf16.msra.mxu0 0
        %360 = vmatprep.subr.bf16.mxu0 0
        %361 = vmatpush1.bf16.msra.mxu0 0
        %362 = vmatprep.subr.bf16.mxu0 0
        %363 = vmatpush1.bf16.msra.mxu0 %v299
        %364 = vmatprep.subr.bf16.mxu0 0
        %365 = vmatpush2.bf16.msra.mxu0 0
        %366 = vmatprep.subr.bf16.mxu0 0
        %367 = vmatpush2.bf16.msra.mxu0 0
        %368 = vmatprep.subr.bf16.mxu0 0
        %369 = vmatpush2.bf16.msra.mxu0 0
        %370 = vmatprep.subr.bf16.mxu0 0
        %371 = vmatpush2.bf16.msra.mxu0 0
        %372 = vmatprep.subr.bf16.mxu0 0
        %373 = vmatpush2.bf16.msra.mxu0 0
        %374 = vmatprep.subr.bf16.mxu0 0
        %375 = vmatpush2.bf16.msra.mxu0 0
        %376 = vmatprep.subr.bf16.mxu0 0
        %377 = vmatpush2.bf16.msra.mxu0 0
        %378 = vmatprep.subr.bf16.mxu0 0
        %379 = vmatpush2.bf16.msra.mxu0 0
        %380 = vmatprep.mubr.bf16.mxu0 0
        %381 = vmatmul.mubr.bf16.gmra.mxu0 %v305
        %v382 = vpop.f32.mrf.mxu0
        %v383 = vadd.f32 0.0, %v382
        %v384 = vpop.f32.mrf.mxu0
        %v385 = vpop.f32.mrf.mxu0
        %v386 = vpop.f32.mrf.mxu0
        %387 = vdwg.mxu0
        %388 = vst [vmem:[#allocation3] sm:$0xff] %v342
        %389 = vst [vmem:[#allocation3 + $0x8] sm:$0xff] %v344
        %390 = vst [vmem:[#allocation3 + $0x10] sm:$0xff] %v383
        %s391 = scalar_lea.vmem %s242, 4
        %v392 = vld [vmem:[%s391] sm:$0xf]
        %v394 = vsel %vm303, %v392, 0
        %396 = vmatprep.subr.bf16.mxu0 0
        %397 = vmatpush1.bf16.msra.mxu0 0
        %398 = vmatprep.subr.bf16.mxu0 0
        %399 = vmatpush1.bf16.msra.mxu0 0
        %400 = vmatprep.subr.bf16.mxu0 0
        %401 = vmatpush1.bf16.msra.mxu0 0
        %402 = vmatprep.subr.bf16.mxu0 0
        %403 = vmatpush1.bf16.msra.mxu0 0
        %404 = vmatprep.subr.bf16.mxu0 0
        %405 = vmatpush1.bf16.msra.mxu0 0
        %406 = vmatprep.subr.bf16.mxu0 0
        %407 = vmatpush1.bf16.msra.mxu0 0
        %408 = vmatprep.subr.bf16.mxu0 0
        %409 = vmatpush1.bf16.msra.mxu0 0
        %410 = vmatprep.subr.bf16.mxu0 %v298
        %411 = vmatpush1.bf16.msra.mxu0 %v297
        %412 = vmatprep.subr.bf16.mxu0 0
        %413 = vmatpush2.bf16.msra.mxu0 0
        %414 = vmatprep.subr.bf16.mxu0 0
        %415 = vmatpush2.bf16.msra.mxu0 0
        %416 = vmatprep.subr.bf16.mxu0 0
        %417 = vmatpush2.bf16.msra.mxu0 0
        %418 = vmatprep.subr.bf16.mxu0 0
        %419 = vmatpush2.bf16.msra.mxu0 0
        %420 = vmatprep.subr.bf16.mxu0 0
        %421 = vmatpush2.bf16.msra.mxu0 0
        %422 = vmatprep.subr.bf16.mxu0 0
        %423 = vmatpush2.bf16.msra.mxu0 0
        %424 = vmatprep.subr.bf16.mxu0 0
        %425 = vmatpush2.bf16.msra.mxu0 0
        %426 = vmatprep.subr.bf16.mxu0 0
        %427 = vmatpush2.bf16.msra.mxu0 0
        %428 = vmatprep.mubr.bf16.mxu0 0
        %429 = vmatmul.mubr.bf16.gmra.mxu0 %v394
        %v430 = vpop.f32.mrf.mxu0
        %v431 = vadd.f32 0.0, %v430
        %v432 = vpop.f32.mrf.mxu0
        %v433 = vadd.f32 0.0, %v432
        %v434 = vpop.f32.mrf.mxu0
        %v435 = vpop.f32.mrf.mxu0
        %436 = vdwg.mxu0
        %437 = vmatprep.subr.bf16.mxu0 0
        %438 = vmatpush1.bf16.msra.mxu0 0
        %439 = vmatprep.subr.bf16.mxu0 0
        %440 = vmatpush1.bf16.msra.mxu0 0
        %441 = vmatprep.subr.bf16.mxu0 0
        %442 = vmatpush1.bf16.msra.mxu0 0
        %443 = vmatprep.subr.bf16.mxu0 0
        %444 = vmatpush1.bf16.msra.mxu0 0
        %445 = vmatprep.subr.bf16.mxu0 0
        %446 = vmatpush1.bf16.msra.mxu0 0
        %447 = vmatprep.subr.bf16.mxu0 0
        %448 = vmatpush1.bf16.msra.mxu0 0
        %449 = vmatprep.subr.bf16.mxu0 0
        %450 = vmatpush1.bf16.msra.mxu0 0
        %451 = vmatprep.subr.bf16.mxu0 0
        %452 = vmatpush1.bf16.msra.mxu0 %v299
        %453 = vmatprep.subr.bf16.mxu0 0
        %454 = vmatpush2.bf16.msra.mxu0 0
        %455 = vmatprep.subr.bf16.mxu0 0
        %456 = vmatpush2.bf16.msra.mxu0 0
        %457 = vmatprep.subr.bf16.mxu0 0
        %458 = vmatpush2.bf16.msra.mxu0 0
        %459 = vmatprep.subr.bf16.mxu0 0
        %460 = vmatpush2.bf16.msra.mxu0 0
        %461 = vmatprep.subr.bf16.mxu0 0
        %462 = vmatpush2.bf16.msra.mxu0 0
        %463 = vmatprep.subr.bf16.mxu0 0
        %464 = vmatpush2.bf16.msra.mxu0 0
        %465 = vmatprep.subr.bf16.mxu0 0
        %466 = vmatpush2.bf16.msra.mxu0 0
        %467 = vmatprep.subr.bf16.mxu0 0
        %468 = vmatpush2.bf16.msra.mxu0 0
        %469 = vmatprep.mubr.bf16.mxu0 0
        %470 = vmatmul.mubr.bf16.gmra.mxu0 %v394
        %v471 = vpop.f32.mrf.mxu0
        %v472 = vadd.f32 0.0, %v471
        %v473 = vpop.f32.mrf.mxu0
        %v474 = vpop.f32.mrf.mxu0
        %v475 = vpop.f32.mrf.mxu0
        %476 = vdwg.mxu0
        %s477 = scalar_lea.vmem [#allocation3], 24
        %478 = vst [vmem:[%s477] sm:$0xff] %v431
        %479 = vst [vmem:[%s477 + $0x8] sm:$0xff] %v433
        %480 = vst [vmem:[%s477 + $0x10] sm:$0xff] %v472
        %s481 = scalar_lea.vmem %s242, 8
        %v482 = vld [vmem:[%s481] sm:$0xf]
        %v484 = vsel %vm303, %v482, 0
        %486 = vmatprep.subr.bf16.mxu0 0
        %487 = vmatpush1.bf16.msra.mxu0 0
        %488 = vmatprep.subr.bf16.mxu0 0
        %489 = vmatpush1.bf16.msra.mxu0 0
        %490 = vmatprep.subr.bf16.mxu0 0
        %491 = vmatpush1.bf16.msra.mxu0 0
        %492 = vmatprep.subr.bf16.mxu0 0
        %493 = vmatpush1.bf16.msra.mxu0 0
        %494 = vmatprep.subr.bf16.mxu0 0
        %495 = vmatpush1.bf16.msra.mxu0 0
        %496 = vmatprep.subr.bf16.mxu0 0
        %497 = vmatpush1.bf16.msra.mxu0 0
        %498 = vmatprep.subr.bf16.mxu0 0
        %499 = vmatpush1.bf16.msra.mxu0 0
        %500 = vmatprep.subr.bf16.mxu0 %v298
        %501 = vmatpush1.bf16.msra.mxu0 %v297
        %502 = vmatprep.subr.bf16.mxu0 0
        %503 = vmatpush2.bf16.msra.mxu0 0
        %504 = vmatprep.subr.bf16.mxu0 0
        %505 = vmatpush2.bf16.msra.mxu0 0
        %506 = vmatprep.subr.bf16.mxu0 0
        %507 = vmatpush2.bf16.msra.mxu0 0
        %508 = vmatprep.subr.bf16.mxu0 0
        %509 = vmatpush2.bf16.msra.mxu0 0
        %510 = vmatprep.subr.bf16.mxu0 0
        %511 = vmatpush2.bf16.msra.mxu0 0
        %512 = vmatprep.subr.bf16.mxu0 0
        %513 = vmatpush2.bf16.msra.mxu0 0
        %514 = vmatprep.subr.bf16.mxu0 0
        %515 = vmatpush2.bf16.msra.mxu0 0
        %516 = vmatprep.subr.bf16.mxu0 0
        %517 = vmatpush2.bf16.msra.mxu0 0
        %518 = vmatprep.mubr.bf16.mxu0 0
        %519 = vmatmul.mubr.bf16.gmra.mxu0 %v484
        %v520 = vpop.f32.mrf.mxu0
        %v521 = vadd.f32 0.0, %v520
        %v522 = vpop.f32.mrf.mxu0
        %v523 = vadd.f32 0.0, %v522
        %v524 = vpop.f32.mrf.mxu0
        %v525 = vpop.f32.mrf.mxu0
        %526 = vdwg.mxu0
        %527 = vmatprep.subr.bf16.mxu0 0
        %528 = vmatpush1.bf16.msra.mxu0 0
        %529 = vmatprep.subr.bf16.mxu0 0
        %530 = vmatpush1.bf16.msra.mxu0 0
        %531 = vmatprep.subr.bf16.mxu0 0
        %532 = vmatpush1.bf16.msra.mxu0 0
        %533 = vmatprep.subr.bf16.mxu0 0
        %534 = vmatpush1.bf16.msra.mxu0 0
        %535 = vmatprep.subr.bf16.mxu0 0
        %536 = vmatpush1.bf16.msra.mxu0 0
        %537 = vmatprep.subr.bf16.mxu0 0
        %538 = vmatpush1.bf16.msra.mxu0 0
        %539 = vmatprep.subr.bf16.mxu0 0
        %540 = vmatpush1.bf16.msra.mxu0 0
        %541 = vmatprep.subr.bf16.mxu0 0
        %542 = vmatpush1.bf16.msra.mxu0 %v299
        %543 = vmatprep.subr.bf16.mxu0 0
        %544 = vmatpush2.bf16.msra.mxu0 0
        %545 = vmatprep.subr.bf16.mxu0 0
        %546 = vmatpush2.bf16.msra.mxu0 0
        %547 = vmatprep.subr.bf16.mxu0 0
        %548 = vmatpush2.bf16.msra.mxu0 0
        %549 = vmatprep.subr.bf16.mxu0 0
        %550 = vmatpush2.bf16.msra.mxu0 0
        %551 = vmatprep.subr.bf16.mxu0 0
        %552 = vmatpush2.bf16.msra.mxu0 0
        %553 = vmatprep.subr.bf16.mxu0 0
        %554 = vmatpush2.bf16.msra.mxu0 0
        %555 = vmatprep.subr.bf16.mxu0 0
        %556 = vmatpush2.bf16.msra.mxu0 0
        %557 = vmatprep.subr.bf16.mxu0 0
        %558 = vmatpush2.bf16.msra.mxu0 0
        %559 = vmatprep.mubr.bf16.mxu0 0
        %560 = vmatmul.mubr.bf16.gmra.mxu0 %v484
        %v561 = vpop.f32.mrf.mxu0
        %v562 = vadd.f32 0.0, %v561
        %v563 = vpop.f32.mrf.mxu0
        %v564 = vpop.f32.mrf.mxu0
        %v565 = vpop.f32.mrf.mxu0
        %566 = vdwg.mxu0
        %s567 = scalar_lea.vmem [#allocation3], 48
        %568 = vst [vmem:[%s567] sm:$0xff] %v521
        %569 = vst [vmem:[%s567 + $0x8] sm:$0xff] %v523
        %570 = vst [vmem:[%s567 + $0x10] sm:$0xff] %v562
        %s571 = scalar_lea.vmem %s242, 12
        %v572 = vld [vmem:[%s571] sm:$0xf]
        %v574 = vsel %vm303, %v572, 0
        %576 = vmatprep.subr.bf16.mxu0 0
        %577 = vmatpush1.bf16.msra.mxu0 0
        %578 = vmatprep.subr.bf16.mxu0 0
        %579 = vmatpush1.bf16.msra.mxu0 0
        %580 = vmatprep.subr.bf16.mxu0 0
        %581 = vmatpush1.bf16.msra.mxu0 0
        %582 = vmatprep.subr.bf16.mxu0 0
        %583 = vmatpush1.bf16.msra.mxu0 0
        %584 = vmatprep.subr.bf16.mxu0 0
        %585 = vmatpush1.bf16.msra.mxu0 0
        %586 = vmatprep.subr.bf16.mxu0 0
        %587 = vmatpush1.bf16.msra.mxu0 0
        %588 = vmatprep.subr.bf16.mxu0 0
        %589 = vmatpush1.bf16.msra.mxu0 0
        %590 = vmatprep.subr.bf16.mxu0 %v298
        %591 = vmatpush1.bf16.msra.mxu0 %v297
        %592 = vmatprep.subr.bf16.mxu0 0
        %593 = vmatpush2.bf16.msra.mxu0 0
        %594 = vmatprep.subr.bf16.mxu0 0
        %595 = vmatpush2.bf16.msra.mxu0 0
        %596 = vmatprep.subr.bf16.mxu0 0
        %597 = vmatpush2.bf16.msra.mxu0 0
        %598 = vmatprep.subr.bf16.mxu0 0
        %599 = vmatpush2.bf16.msra.mxu0 0
        %600 = vmatprep.subr.bf16.mxu0 0
        %601 = vmatpush2.bf16.msra.mxu0 0
        %602 = vmatprep.subr.bf16.mxu0 0
        %603 = vmatpush2.bf16.msra.mxu0 0
        %604 = vmatprep.subr.bf16.mxu0 0
        %605 = vmatpush2.bf16.msra.mxu0 0
        %606 = vmatprep.subr.bf16.mxu0 0
        %607 = vmatpush2.bf16.msra.mxu0 0
        %608 = vmatprep.mubr.bf16.mxu0 0
        %609 = vmatmul.mubr.bf16.gmra.mxu0 %v574
        %v610 = vpop.f32.mrf.mxu0
        %v611 = vadd.f32 0.0, %v610
        %v612 = vpop.f32.mrf.mxu0
        %v613 = vadd.f32 0.0, %v612
        %v614 = vpop.f32.mrf.mxu0
        %v615 = vpop.f32.mrf.mxu0
        %616 = vdwg.mxu0
        %617 = vmatprep.subr.bf16.mxu0 0
        %618 = vmatpush1.bf16.msra.mxu0 0
        %619 = vmatprep.subr.bf16.mxu0 0
        %620 = vmatpush1.bf16.msra.mxu0 0
        %621 = vmatprep.subr.bf16.mxu0 0
        %622 = vmatpush1.bf16.msra.mxu0 0
        %623 = vmatprep.subr.bf16.mxu0 0
        %624 = vmatpush1.bf16.msra.mxu0 0
        %625 = vmatprep.subr.bf16.mxu0 0
        %626 = vmatpush1.bf16.msra.mxu0 0
        %627 = vmatprep.subr.bf16.mxu0 0
        %628 = vmatpush1.bf16.msra.mxu0 0
        %629 = vmatprep.subr.bf16.mxu0 0
        %630 = vmatpush1.bf16.msra.mxu0 0
        %631 = vmatprep.subr.bf16.mxu0 0
        %632 = vmatpush1.bf16.msra.mxu0 %v299
        %633 = vmatprep.subr.bf16.mxu0 0
        %634 = vmatpush2.bf16.msra.mxu0 0
        %635 = vmatprep.subr.bf16.mxu0 0
        %636 = vmatpush2.bf16.msra.mxu0 0
        %637 = vmatprep.subr.bf16.mxu0 0
        %638 = vmatpush2.bf16.msra.mxu0 0
        %639 = vmatprep.subr.bf16.mxu0 0
        %640 = vmatpush2.bf16.msra.mxu0 0
        %641 = vmatprep.subr.bf16.mxu0 0
        %642 = vmatpush2.bf16.msra.mxu0 0
        %643 = vmatprep.subr.bf16.mxu0 0
        %644 = vmatpush2.bf16.msra.mxu0 0
        %645 = vmatprep.subr.bf16.mxu0 0
        %646 = vmatpush2.bf16.msra.mxu0 0
        %647 = vmatprep.subr.bf16.mxu0 0
        %648 = vmatpush2.bf16.msra.mxu0 0
        %649 = vmatprep.mubr.bf16.mxu0 0
        %650 = vmatmul.mubr.bf16.gmra.mxu0 %v574
        %v651 = vpop.f32.mrf.mxu0
        %v652 = vadd.f32 0.0, %v651
        %v653 = vpop.f32.mrf.mxu0
        %v654 = vpop.f32.mrf.mxu0
        %v655 = vpop.f32.mrf.mxu0
        %656 = vdwg.mxu0
        %s657 = scalar_lea.vmem [#allocation3], 72
        %658 = vst [vmem:[%s657] sm:$0xff] %v611
        %659 = vst [vmem:[%s657 + $0x8] sm:$0xff] %v613
        %660 = vst [vmem:[%s657 + $0x10] sm:$0xff] %v652
        %p661 = scmp.ne.s32.totalorder %s23, 2
        // Predicated region
        $region49: #{tpu_custom_call.1} parent=35 // pred_check
          %p662 = pneg %p661
        $region50: #{tpu_custom_call.1} parent=35 // pred_check_branch
          %664 = sbr.rel (%p662) target = $region52
        $region51: #{tpu_custom_call.1} parent=35 // pred_region
          %v665 = vld [vmem:[#allocation2] sm:$0xff]
          %v666 = vld [vmem:[#allocation3] sm:$0xff]
          %v667 = vld [vmem:[#allocation3 + $0x8] sm:$0xff]
          %v668 = vld [vmem:[#allocation3 + $0x10] sm:$0xff]
          %v669 = vpack.c.bf16 %v665, %v665
          %v702 = vunpack.c.l.b16 %v254
          %v703 = vunpack.c.h.b16 %v254
          %v704 = vunpack.c.l.b16 %v255
          %v705 = vunpack.c.l.b16 %v256
          %v706 = vunpack.c.h.b16 %v256
          %v707 = vunpack.c.l.b16 %v257
          %v708 = vunpack.c.l.b16 %v258
          %v709 = vunpack.c.h.b16 %v258
          %v710 = vunpack.c.l.b16 %v259
          %v711 = vunpack.c.l.b16 %v260
          %v712 = vunpack.c.h.b16 %v260
          %v713 = vunpack.c.l.b16 %v261
          %v714 = vunpack.c.l.b16 %v262
          %v715 = vunpack.c.h.b16 %v262
          %v716 = vunpack.c.l.b16 %v263
          %v717 = vunpack.c.l.b16 %v264
          %v718 = vunpack.c.h.b16 %v264
          %v719 = vunpack.c.l.b16 %v265
          %v720 = vunpack.c.l.b16 %v266
          %v721 = vunpack.c.h.b16 %v266
          %v722 = vunpack.c.l.b16 %v267
          %v723 = vunpack.c.l.b16 %v268
          %v724 = vunpack.c.h.b16 %v268
          %v725 = vunpack.c.l.b16 %v269
          %v726 = vunpack.c.l.b16 %v270
          %v727 = vunpack.c.h.b16 %v270
          %v728 = vunpack.c.l.b16 %v271
          %v729 = vunpack.c.l.b16 %v272
          %v730 = vunpack.c.h.b16 %v272
          %v731 = vunpack.c.l.b16 %v273
          %v732 = vunpack.c.l.b16 %v274
          %v733 = vunpack.c.h.b16 %v274
          %v734 = vunpack.c.l.b16 %v275
          %v735 = vunpack.c.l.b16 %v276
          %v736 = vunpack.c.h.b16 %v276
          %v737 = vunpack.c.l.b16 %v277
          %v738 = vunpack.c.l.b16 %v278
          %v739 = vunpack.c.h.b16 %v278
          %v740 = vunpack.c.l.b16 %v279
          %v741 = vunpack.c.l.b16 %v280
          %v742 = vunpack.c.h.b16 %v280
          %v743 = vunpack.c.l.b16 %v281
          %v744 = vunpack.c.l.b16 %v282
          %v745 = vunpack.c.h.b16 %v282
          %v746 = vunpack.c.l.b16 %v283
          %v747 = vunpack.c.l.b16 %v284
          %v748 = vunpack.c.h.b16 %v284
          %v749 = vunpack.c.l.b16 %v285
          %v750 = vpack.c.b16 %v705, %v702
          %v751 = vpack.c.b16 %v706, %v703
          %v752 = vpack.c.b16 %v707, %v704
          %v753 = vpack.c.b16 %v711, %v708
          %v754 = vpack.c.b16 %v712, %v709
          %v755 = vpack.c.b16 %v713, %v710
          %v756 = vpack.c.b16 %v717, %v714
          %v757 = vpack.c.b16 %v718, %v715
          %v758 = vpack.c.b16 %v719, %v716
          %v759 = vpack.c.b16 %v723, %v720
          %v760 = vpack.c.b16 %v724, %v721
          %v761 = vpack.c.b16 %v725, %v722
          %v762 = vpack.c.b16 %v729, %v726
          %v763 = vpack.c.b16 %v730, %v727
          %v764 = vpack.c.b16 %v731, %v728
          %v765 = vpack.c.b16 %v735, %v732
          %v766 = vpack.c.b16 %v736, %v733
          %v767 = vpack.c.b16 %v737, %v734
          %v768 = vpack.c.b16 %v741, %v738
          %v769 = vpack.c.b16 %v742, %v739
          %v770 = vpack.c.b16 %v743, %v740
          %v771 = vpack.c.b16 %v747, %v744
          %v772 = vpack.c.b16 %v748, %v745
          %v773 = vpack.c.b16 %v749, %v746
          %798 = vmatprep.subr.bf16.mxu0 %v772
          %799 = vmatpush1.bf16.msra.mxu0 %v771
          %800 = vmatprep.subr.bf16.mxu0 %v769
          %801 = vmatpush1.bf16.msra.mxu0 %v768
          %802 = vmatprep.subr.bf16.mxu0 %v766
          %803 = vmatpush1.bf16.msra.mxu0 %v765
          %804 = vmatprep.subr.bf16.mxu0 %v763
          %805 = vmatpush1.bf16.msra.mxu0 %v762
          %806 = vmatprep.subr.bf16.mxu0 %v760
          %807 = vmatpush1.bf16.msra.mxu0 %v759
          %808 = vmatprep.subr.bf16.mxu0 %v757
          %809 = vmatpush1.bf16.msra.mxu0 %v756
          %810 = vmatprep.subr.bf16.mxu0 %v754
          %811 = vmatpush1.bf16.msra.mxu0 %v753
          %812 = vmatprep.subr.bf16.mxu0 %v751
          %813 = vmatpush1.bf16.msra.mxu0 %v750
          %814 = vmatprep.subr.bf16.mxu0 0
          %815 = vmatpush2.bf16.msra.mxu0 0
          %816 = vmatprep.subr.bf16.mxu0 0
          %817 = vmatpush2.bf16.msra.mxu0 0
          %818 = vmatprep.subr.bf16.mxu0 0
          %819 = vmatpush2.bf16.msra.mxu0 0
          %820 = vmatprep.subr.bf16.mxu0 0
          %821 = vmatpush2.bf16.msra.mxu0 0
          %822 = vmatprep.subr.bf16.mxu0 0
          %823 = vmatpush2.bf16.msra.mxu0 0
          %824 = vmatprep.subr.bf16.mxu0 0
          %825 = vmatpush2.bf16.msra.mxu0 0
          %826 = vmatprep.subr.bf16.mxu0 0
          %827 = vmatpush2.bf16.msra.mxu0 0
          %828 = vmatprep.subr.bf16.mxu0 0
          %829 = vmatpush2.bf16.msra.mxu0 0
          %830 = vmatprep.mubr.bf16.mxu0 0
          %831 = vmatmul.mubr.bf16.gmra.mxu0 %v669
          %v832 = vpop.f32.mrf.mxu0
          %v833 = vadd.f32 0.0, %v832
          %v834 = vpop.f32.mrf.mxu0
          %v835 = vadd.f32 0.0, %v834
          %v836 = vpop.f32.mrf.mxu0
          %v837 = vpop.f32.mrf.mxu0
          %838 = vdwg.mxu0
          %839 = vmatprep.subr.bf16.mxu0 0
          %840 = vmatpush1.bf16.msra.mxu0 %v773
          %841 = vmatprep.subr.bf16.mxu0 0
          %842 = vmatpush1.bf16.msra.mxu0 %v770
          %843 = vmatprep.subr.bf16.mxu0 0
          %844 = vmatpush1.bf16.msra.mxu0 %v767
          %845 = vmatprep.subr.bf16.mxu0 0
          %846 = vmatpush1.bf16.msra.mxu0 %v764
          %847 = vmatprep.subr.bf16.mxu0 0
          %848 = vmatpush1.bf16.msra.mxu0 %v761
          %849 = vmatprep.subr.bf16.mxu0 0
          %850 = vmatpush1.bf16.msra.mxu0 %v758
          %851 = vmatprep.subr.bf16.mxu0 0
          %852 = vmatpush1.bf16.msra.mxu0 %v755
          %853 = vmatprep.subr.bf16.mxu0 0
          %854 = vmatpush1.bf16.msra.mxu0 %v752
          %855 = vmatprep.subr.bf16.mxu0 0
          %856 = vmatpush2.bf16.msra.mxu0 0
          %857 = vmatprep.subr.bf16.mxu0 0
          %858 = vmatpush2.bf16.msra.mxu0 0
          %859 = vmatprep.subr.bf16.mxu0 0
          %860 = vmatpush2.bf16.msra.mxu0 0
          %861 = vmatprep.subr.bf16.mxu0 0
          %862 = vmatpush2.bf16.msra.mxu0 0
          %863 = vmatprep.subr.bf16.mxu0 0
          %864 = vmatpush2.bf16.msra.mxu0 0
          %865 = vmatprep.subr.bf16.mxu0 0
          %866 = vmatpush2.bf16.msra.mxu0 0
          %867 = vmatprep.subr.bf16.mxu0 0
          %868 = vmatpush2.bf16.msra.mxu0 0
          %869 = vmatprep.subr.bf16.mxu0 0
          %870 = vmatpush2.bf16.msra.mxu0 0
          %871 = vmatprep.mubr.bf16.mxu0 0
          %872 = vmatmul.mubr.bf16.gmra.mxu0 %v669
          %v873 = vpop.f32.mrf.mxu0
          %v874 = vadd.f32 0.0, %v873
          %v875 = vpop.f32.mrf.mxu0
          %v876 = vpop.f32.mrf.mxu0
          %v877 = vpop.f32.mrf.mxu0
          %878 = vdwg.mxu0
          %v879 = vadd.f32 %v666, %v833
          %v880 = vxor.u32 %v879, 2147483648
          %v881 = vmul.f32 %v880, 1.442695
          %v882 = vpow.pop %v881
          %v883 = vadd.f32 %v882, 1.0
          %v884 = vrcp.pop %v883
          %v885 = vmul.f32 1.0, %v884
          %v886 = vadd.f32 %v667, %v835
          %v887 = vxor.u32 %v886, 2147483648
          %v888 = vmul.f32 %v887, 1.442695
          %v889 = vpow.pop %v888
          %v890 = vadd.f32 %v889, 1.0
          %v891 = vrcp.pop %v890
          %v892 = vmul.f32 1.0, %v891
          %v893 = vmul.f32 %v885, %v874
          %v894 = vadd.f32 %v668, %v893
          %v895 = vtanh.pop %v894
          %v896 = vsub.f32 %v665, %v895
          %v897 = vmul.f32 %v892, %v896
          %v898 = vadd.f32 %v895, %v897
          %v899 = vld [vmem:[%s477] sm:$0xff]
          %v900 = vld [vmem:[%s477 + $0x8] sm:$0xff]
          %v901 = vld [vmem:[%s477 + $0x10] sm:$0xff]
          %v902 = vpack.c.bf16 %v898, %v898
          %903 = vmatprep.subr.bf16.mxu0 %v772
          %904 = vmatpush1.bf16.msra.mxu0 %v771
          %905 = vmatprep.subr.bf16.mxu0 %v769
          %906 = vmatpush1.bf16.msra.mxu0 %v768
          %907 = vmatprep.subr.bf16.mxu0 %v766
          %908 = vmatpush1.bf16.msra.mxu0 %v765
          %909 = vmatprep.subr.bf16.mxu0 %v763
          %910 = vmatpush1.bf16.msra.mxu0 %v762
          %911 = vmatprep.subr.bf16.mxu0 %v760
          %912 = vmatpush1.bf16.msra.mxu0 %v759
          %913 = vmatprep.subr.bf16.mxu0 %v757
          %914 = vmatpush1.bf16.msra.mxu0 %v756
          %915 = vmatprep.subr.bf16.mxu0 %v754
          %916 = vmatpush1.bf16.msra.mxu0 %v753
          %917 = vmatprep.subr.bf16.mxu0 %v751
          %918 = vmatpush1.bf16.msra.mxu0 %v750
          %919 = vmatprep.subr.bf16.mxu0 0
          %920 = vmatpush2.bf16.msra.mxu0 0
          %921 = vmatprep.subr.bf16.mxu0 0
          %922 = vmatpush2.bf16.msra.mxu0 0
          %923 = vmatprep.subr.bf16.mxu0 0
          %924 = vmatpush2.bf16.msra.mxu0 0
          %925 = vmatprep.subr.bf16.mxu0 0
          %926 = vmatpush2.bf16.msra.mxu0 0
          %927 = vmatprep.subr.bf16.mxu0 0
          %928 = vmatpush2.bf16.msra.mxu0 0
          %929 = vmatprep.subr.bf16.mxu0 0
          %930 = vmatpush2.bf16.msra.mxu0 0
          %931 = vmatprep.subr.bf16.mxu0 0
          %932 = vmatpush2.bf16.msra.mxu0 0
          %933 = vmatprep.subr.bf16.mxu0 0
          %934 = vmatpush2.bf16.msra.mxu0 0
          %935 = vmatprep.mubr.bf16.mxu0 0
          %936 = vmatmul.mubr.bf16.gmra.mxu0 %v902
          %v937 = vpop.f32.mrf.mxu0
          %v938 = vadd.f32 0.0, %v937
          %v939 = vpop.f32.mrf.mxu0
          %v940 = vadd.f32 0.0, %v939
          %v941 = vpop.f32.mrf.mxu0
          %v942 = vpop.f32.mrf.mxu0
          %943 = vdwg.mxu0
          %944 = vmatprep.subr.bf16.mxu0 0
          %945 = vmatpush1.bf16.msra.mxu0 %v773
          %946 = vmatprep.subr.bf16.mxu0 0
          %947 = vmatpush1.bf16.msra.mxu0 %v770
          %948 = vmatprep.subr.bf16.mxu0 0
          %949 = vmatpush1.bf16.msra.mxu0 %v767
          %950 = vmatprep.subr.bf16.mxu0 0
          %951 = vmatpush1.bf16.msra.mxu0 %v764
          %952 = vmatprep.subr.bf16.mxu0 0
          %953 = vmatpush1.bf16.msra.mxu0 %v761
          %954 = vmatprep.subr.bf16.mxu0 0
          %955 = vmatpush1.bf16.msra.mxu0 %v758
          %956 = vmatprep.subr.bf16.mxu0 0
          %957 = vmatpush1.bf16.msra.mxu0 %v755
          %958 = vmatprep.subr.bf16.mxu0 0
          %959 = vmatpush1.bf16.msra.mxu0 %v752
          %960 = vmatprep.subr.bf16.mxu0 0
          %961 = vmatpush2.bf16.msra.mxu0 0
          %962 = vmatprep.subr.bf16.mxu0 0
          %963 = vmatpush2.bf16.msra.mxu0 0
          %964 = vmatprep.subr.bf16.mxu0 0
          %965 = vmatpush2.bf16.msra.mxu0 0
          %966 = vmatprep.subr.bf16.mxu0 0
          %967 = vmatpush2.bf16.msra.mxu0 0
          %968 = vmatprep.subr.bf16.mxu0 0
          %969 = vmatpush2.bf16.msra.mxu0 0
          %970 = vmatprep.subr.bf16.mxu0 0
          %971 = vmatpush2.bf16.msra.mxu0 0
          %972 = vmatprep.subr.bf16.mxu0 0
          %973 = vmatpush2.bf16.msra.mxu0 0
          %974 = vmatprep.subr.bf16.mxu0 0
          %975 = vmatpush2.bf16.msra.mxu0 0
          %976 = vmatprep.mubr.bf16.mxu0 0
          %977 = vmatmul.mubr.bf16.gmra.mxu0 %v902
          %v978 = vpop.f32.mrf.mxu0
          %v979 = vadd.f32 0.0, %v978
          %v980 = vpop.f32.mrf.mxu0
          %v981 = vpop.f32.mrf.mxu0
          %v982 = vpop.f32.mrf.mxu0
          %983 = vdwg.mxu0
          %v984 = vadd.f32 %v899, %v938
          %v985 = vxor.u32 %v984, 2147483648
          %v986 = vmul.f32 %v985, 1.442695
          %v987 = vpow.pop %v986
          %v988 = vadd.f32 %v987, 1.0
          %v989 = vrcp.pop %v988
          %v990 = vmul.f32 1.0, %v989
          %v991 = vadd.f32 %v900, %v940
          %v992 = vxor.u32 %v991, 2147483648
          %v993 = vmul.f32 %v992, 1.442695
          %v994 = vpow.pop %v993
          %v995 = vadd.f32 %v994, 1.0
          %v996 = vrcp.pop %v995
          %v997 = vmul.f32 1.0, %v996
          %v998 = vmul.f32 %v990, %v979
          %v999 = vadd.f32 %v901, %v998
          %v1000 = vtanh.pop %v999
          %v1001 = vsub.f32 %v898, %v1000
          %v1002 = vmul.f32 %v997, %v1001
          %v1003 = vadd.f32 %v1000, %v1002
          %v1004 = vld [vmem:[%s567] sm:$0xff]
          %v1005 = vld [vmem:[%s567 + $0x8] sm:$0xff]
          %v1006 = vld [vmem:[%s567 + $0x10] sm:$0xff]
          %v1007 = vpack.c.bf16 %v1003, %v1003
          %1008 = vmatprep.subr.bf16.mxu0 %v772
          %1009 = vmatpush1.bf16.msra.mxu0 %v771
          %1010 = vmatprep.subr.bf16.mxu0 %v769
          %1011 = vmatpush1.bf16.msra.mxu0 %v768
          %1012 = vmatprep.subr.bf16.mxu0 %v766
          %1013 = vmatpush1.bf16.msra.mxu0 %v765
          %1014 = vmatprep.subr.bf16.mxu0 %v763
          %1015 = vmatpush1.bf16.msra.mxu0 %v762
          %1016 = vmatprep.subr.bf16.mxu0 %v760
          %1017 = vmatpush1.bf16.msra.mxu0 %v759
          %1018 = vmatprep.subr.bf16.mxu0 %v757
          %1019 = vmatpush1.bf16.msra.mxu0 %v756
          %1020 = vmatprep.subr.bf16.mxu0 %v754
          %1021 = vmatpush1.bf16.msra.mxu0 %v753
          %1022 = vmatprep.subr.bf16.mxu0 %v751
          %1023 = vmatpush1.bf16.msra.mxu0 %v750
          %1024 = vmatprep.subr.bf16.mxu0 0
          %1025 = vmatpush2.bf16.msra.mxu0 0
          %1026 = vmatprep.subr.bf16.mxu0 0
          %1027 = vmatpush2.bf16.msra.mxu0 0
          %1028 = vmatprep.subr.bf16.mxu0 0
          %1029 = vmatpush2.bf16.msra.mxu0 0
          %1030 = vmatprep.subr.bf16.mxu0 0
          %1031 = vmatpush2.bf16.msra.mxu0 0
          %1032 = vmatprep.subr.bf16.mxu0 0
          %1033 = vmatpush2.bf16.msra.mxu0 0
          %1034 = vmatprep.subr.bf16.mxu0 0
          %1035 = vmatpush2.bf16.msra.mxu0 0
          %1036 = vmatprep.subr.bf16.mxu0 0
          %1037 = vmatpush2.bf16.msra.mxu0 0
          %1038 = vmatprep.subr.bf16.mxu0 0
          %1039 = vmatpush2.bf16.msra.mxu0 0
          %1040 = vmatprep.mubr.bf16.mxu0 0
          %1041 = vmatmul.mubr.bf16.gmra.mxu0 %v1007
          %v1042 = vpop.f32.mrf.mxu0
          %v1043 = vadd.f32 0.0, %v1042
          %v1044 = vpop.f32.mrf.mxu0
          %v1045 = vadd.f32 0.0, %v1044
          %v1046 = vpop.f32.mrf.mxu0
          %v1047 = vpop.f32.mrf.mxu0
          %1048 = vdwg.mxu0
          %1049 = vmatprep.subr.bf16.mxu0 0
          %1050 = vmatpush1.bf16.msra.mxu0 %v773
          %1051 = vmatprep.subr.bf16.mxu0 0
          %1052 = vmatpush1.bf16.msra.mxu0 %v770
          %1053 = vmatprep.subr.bf16.mxu0 0
          %1054 = vmatpush1.bf16.msra.mxu0 %v767
          %1055 = vmatprep.subr.bf16.mxu0 0
          %1056 = vmatpush1.bf16.msra.mxu0 %v764
          %1057 = vmatprep.subr.bf16.mxu0 0
          %1058 = vmatpush1.bf16.msra.mxu0 %v761
          %1059 = vmatprep.subr.bf16.mxu0 0
          %1060 = vmatpush1.bf16.msra.mxu0 %v758
          %1061 = vmatprep.subr.bf16.mxu0 0
          %1062 = vmatpush1.bf16.msra.mxu0 %v755
          %1063 = vmatprep.subr.bf16.mxu0 0
          %1064 = vmatpush1.bf16.msra.mxu0 %v752
          %1065 = vmatprep.subr.bf16.mxu0 0
          %1066 = vmatpush2.bf16.msra.mxu0 0
          %1067 = vmatprep.subr.bf16.mxu0 0
          %1068 = vmatpush2.bf16.msra.mxu0 0
          %1069 = vmatprep.subr.bf16.mxu0 0
          %1070 = vmatpush2.bf16.msra.mxu0 0
          %1071 = vmatprep.subr.bf16.mxu0 0
          %1072 = vmatpush2.bf16.msra.mxu0 0
          %1073 = vmatprep.subr.bf16.mxu0 0
          %1074 = vmatpush2.bf16.msra.mxu0 0
          %1075 = vmatprep.subr.bf16.mxu0 0
          %1076 = vmatpush2.bf16.msra.mxu0 0
          %1077 = vmatprep.subr.bf16.mxu0 0
          %1078 = vmatpush2.bf16.msra.mxu0 0
          %1079 = vmatprep.subr.bf16.mxu0 0
          %1080 = vmatpush2.bf16.msra.mxu0 0
          %1081 = vmatprep.mubr.bf16.mxu0 0
          %1082 = vmatmul.mubr.bf16.gmra.mxu0 %v1007
          %v1083 = vpop.f32.mrf.mxu0
          %v1084 = vadd.f32 0.0, %v1083
          %v1085 = vpop.f32.mrf.mxu0
          %v1086 = vpop.f32.mrf.mxu0
          %v1087 = vpop.f32.mrf.mxu0
          %1088 = vdwg.mxu0
          %v1089 = vadd.f32 %v1004, %v1043
          %v1090 = vxor.u32 %v1089, 2147483648
          %v1091 = vmul.f32 %v1090, 1.442695
          %v1092 = vpow.pop %v1091
          %v1093 = vadd.f32 %v1092, 1.0
          %v1094 = vrcp.pop %v1093
          %v1095 = vmul.f32 1.0, %v1094
          %v1096 = vadd.f32 %v1005, %v1045
          %v1097 = vxor.u32 %v1096, 2147483648
          %v1098 = vmul.f32 %v1097, 1.442695
          %v1099 = vpow.pop %v1098
          %v1100 = vadd.f32 %v1099, 1.0
          %v1101 = vrcp.pop %v1100
          %v1102 = vmul.f32 1.0, %v1101
          %v1103 = vmul.f32 %v1095, %v1084
          %v1104 = vadd.f32 %v1006, %v1103
          %v1105 = vtanh.pop %v1104
          %v1106 = vsub.f32 %v1003, %v1105
          %v1107 = vmul.f32 %v1102, %v1106
          %v1108 = vadd.f32 %v1105, %v1107
          %v1109 = vld [vmem:[%s657] sm:$0xff]
          %v1110 = vld [vmem:[%s657 + $0x8] sm:$0xff]
          %v1111 = vld [vmem:[%s657 + $0x10] sm:$0xff]
          %v1112 = vpack.c.bf16 %v1108, %v1108
          %1113 = vmatprep.subr.bf16.mxu0 %v772
          %1114 = vmatpush1.bf16.msra.mxu0 %v771
          %1115 = vmatprep.subr.bf16.mxu0 %v769
          %1116 = vmatpush1.bf16.msra.mxu0 %v768
          %1117 = vmatprep.subr.bf16.mxu0 %v766
          %1118 = vmatpush1.bf16.msra.mxu0 %v765
          %1119 = vmatprep.subr.bf16.mxu0 %v763
          %1120 = vmatpush1.bf16.msra.mxu0 %v762
          %1121 = vmatprep.subr.bf16.mxu0 %v760
          %1122 = vmatpush1.bf16.msra.mxu0 %v759
          %1123 = vmatprep.subr.bf16.mxu0 %v757
          %1124 = vmatpush1.bf16.msra.mxu0 %v756
          %1125 = vmatprep.subr.bf16.mxu0 %v754
          %1126 = vmatpush1.bf16.msra.mxu0 %v753
          %1127 = vmatprep.subr.bf16.mxu0 %v751
          %1128 = vmatpush1.bf16.msra.mxu0 %v750
          %1129 = vmatprep.subr.bf16.mxu0 0
          %1130 = vmatpush2.bf16.msra.mxu0 0
          %1131 = vmatprep.subr.bf16.mxu0 0
          %1132 = vmatpush2.bf16.msra.mxu0 0
          %1133 = vmatprep.subr.bf16.mxu0 0
          %1134 = vmatpush2.bf16.msra.mxu0 0
          %1135 = vmatprep.subr.bf16.mxu0 0
          %1136 = vmatpush2.bf16.msra.mxu0 0
          %1137 = vmatprep.subr.bf16.mxu0 0
          %1138 = vmatpush2.bf16.msra.mxu0 0
          %1139 = vmatprep.subr.bf16.mxu0 0
          %1140 = vmatpush2.bf16.msra.mxu0 0
          %1141 = vmatprep.subr.bf16.mxu0 0
          %1142 = vmatpush2.bf16.msra.mxu0 0
          %1143 = vmatprep.subr.bf16.mxu0 0
          %1144 = vmatpush2.bf16.msra.mxu0 0
          %1145 = vmatprep.mubr.bf16.mxu0 0
          %1146 = vmatmul.mubr.bf16.gmra.mxu0 %v1112
          %v1147 = vpop.f32.mrf.mxu0
          %v1148 = vadd.f32 0.0, %v1147
          %v1149 = vpop.f32.mrf.mxu0
          %v1150 = vadd.f32 0.0, %v1149
          %v1151 = vpop.f32.mrf.mxu0
          %v1152 = vpop.f32.mrf.mxu0
          %1153 = vdwg.mxu0
          %1154 = vmatprep.subr.bf16.mxu0 0
          %1155 = vmatpush1.bf16.msra.mxu0 %v773
          %1156 = vmatprep.subr.bf16.mxu0 0
          %1157 = vmatpush1.bf16.msra.mxu0 %v770
          %1158 = vmatprep.subr.bf16.mxu0 0
          %1159 = vmatpush1.bf16.msra.mxu0 %v767
          %1160 = vmatprep.subr.bf16.mxu0 0
          %1161 = vmatpush1.bf16.msra.mxu0 %v764
          %1162 = vmatprep.subr.bf16.mxu0 0
          %1163 = vmatpush1.bf16.msra.mxu0 %v761
          %1164 = vmatprep.subr.bf16.mxu0 0
          %1165 = vmatpush1.bf16.msra.mxu0 %v758
          %1166 = vmatprep.subr.bf16.mxu0 0
          %1167 = vmatpush1.bf16.msra.mxu0 %v755
          %1168 = vmatprep.subr.bf16.mxu0 0
          %1169 = vmatpush1.bf16.msra.mxu0 %v752
          %1170 = vmatprep.subr.bf16.mxu0 0
          %1171 = vmatpush2.bf16.msra.mxu0 0
          %1172 = vmatprep.subr.bf16.mxu0 0
          %1173 = vmatpush2.bf16.msra.mxu0 0
          %1174 = vmatprep.subr.bf16.mxu0 0
          %1175 = vmatpush2.bf16.msra.mxu0 0
          %1176 = vmatprep.subr.bf16.mxu0 0
          %1177 = vmatpush2.bf16.msra.mxu0 0
          %1178 = vmatprep.subr.bf16.mxu0 0
          %1179 = vmatpush2.bf16.msra.mxu0 0
          %1180 = vmatprep.subr.bf16.mxu0 0
          %1181 = vmatpush2.bf16.msra.mxu0 0
          %1182 = vmatprep.subr.bf16.mxu0 0
          %1183 = vmatpush2.bf16.msra.mxu0 0
          %1184 = vmatprep.subr.bf16.mxu0 0
          %1185 = vmatpush2.bf16.msra.mxu0 0
          %1186 = vmatprep.mubr.bf16.mxu0 0
          %1187 = vmatmul.mubr.bf16.gmra.mxu0 %v1112
          %v1188 = vpop.f32.mrf.mxu0
          %v1189 = vadd.f32 0.0, %v1188
          %v1190 = vpop.f32.mrf.mxu0
          %v1191 = vpop.f32.mrf.mxu0
          %v1192 = vpop.f32.mrf.mxu0
          %1193 = vdwg.mxu0
          %v1194 = vadd.f32 %v1109, %v1148
          %v1195 = vxor.u32 %v1194, 2147483648
          %v1196 = vmul.f32 %v1195, 1.442695
          %v1197 = vpow.pop %v1196
          %v1198 = vadd.f32 %v1197, 1.0
          %v1199 = vrcp.pop %v1198
          %v1200 = vmul.f32 1.0, %v1199
          %v1201 = vadd.f32 %v1110, %v1150
          %v1202 = vxor.u32 %v1201, 2147483648
          %v1203 = vmul.f32 %v1202, 1.442695
          %v1204 = vpow.pop %v1203
          %v1205 = vadd.f32 %v1204, 1.0
          %v1206 = vrcp.pop %v1205
          %v1207 = vmul.f32 1.0, %v1206
          %v1208 = vmul.f32 %v1200, %v1189
          %v1209 = vadd.f32 %v1111, %v1208
          %v1210 = vtanh.pop %v1209
          %v1211 = vsub.f32 %v1108, %v1210
          %v1212 = vmul.f32 %v1207, %v1211
          %v1213 = vadd.f32 %v1210, %v1212
          %1214 = vst [vmem:[#allocation2] sm:$0xff] %v1213
        $region52: #{tpu_custom_call.1} parent=35 // pred_fallthru
          _
        %p1215 = scmp.eq.s32.totalorder %s23, 2
        // Predicated region
        $region53: #{tpu_custom_call.1} parent=35 // pred_check
          %p1216 = pneg %p1215
        $region54: #{tpu_custom_call.1} parent=35 // pred_check_branch
          %1218 = sbr.rel (%p1216) target = $region56
        $region55: #{tpu_custom_call.1} parent=35 // pred_region
          %v1219 = vld [vmem:[#allocation2] sm:$0xff]
          %v1220 = vld [vmem:[#allocation3] sm:$0xff]
          %v1221 = vld [vmem:[#allocation3 + $0x8] sm:$0xff]
          %v1222 = vld [vmem:[#allocation3 + $0x10] sm:$0xff]
          %v1223 = vpack.c.bf16 %v1219, %v1219
          %v1256 = vunpack.c.l.b16 %v254
          %v1257 = vunpack.c.h.b16 %v254
          %v1258 = vunpack.c.l.b16 %v255
          %v1259 = vunpack.c.l.b16 %v256
          %v1260 = vunpack.c.h.b16 %v256
          %v1261 = vunpack.c.l.b16 %v257
          %v1262 = vunpack.c.l.b16 %v258
          %v1263 = vunpack.c.h.b16 %v258
          %v1264 = vunpack.c.l.b16 %v259
          %v1265 = vunpack.c.l.b16 %v260
          %v1266 = vunpack.c.h.b16 %v260
          %v1267 = vunpack.c.l.b16 %v261
          %v1268 = vunpack.c.l.b16 %v262
          %v1269 = vunpack.c.h.b16 %v262
          %v1270 = vunpack.c.l.b16 %v263
          %v1271 = vunpack.c.l.b16 %v264
          %v1272 = vunpack.c.h.b16 %v264
          %v1273 = vunpack.c.l.b16 %v265
          %v1274 = vunpack.c.l.b16 %v266
          %v1275 = vunpack.c.h.b16 %v266
          %v1276 = vunpack.c.l.b16 %v267
          %v1277 = vunpack.c.l.b16 %v268
          %v1278 = vunpack.c.h.b16 %v268
          %v1279 = vunpack.c.l.b16 %v269
          %v1280 = vunpack.c.l.b16 %v270
          %v1281 = vunpack.c.h.b16 %v270
          %v1282 = vunpack.c.l.b16 %v271
          %v1283 = vunpack.c.l.b16 %v272
          %v1284 = vunpack.c.h.b16 %v272
          %v1285 = vunpack.c.l.b16 %v273
          %v1286 = vunpack.c.l.b16 %v274
          %v1287 = vunpack.c.h.b16 %v274
          %v1288 = vunpack.c.l.b16 %v275
          %v1289 = vunpack.c.l.b16 %v276
          %v1290 = vunpack.c.h.b16 %v276
          %v1291 = vunpack.c.l.b16 %v277
          %v1292 = vunpack.c.l.b16 %v278
          %v1293 = vunpack.c.h.b16 %v278
          %v1294 = vunpack.c.l.b16 %v279
          %v1295 = vunpack.c.l.b16 %v280
          %v1296 = vunpack.c.h.b16 %v280
          %v1297 = vunpack.c.l.b16 %v281
          %v1298 = vunpack.c.l.b16 %v282
          %v1299 = vunpack.c.h.b16 %v282
          %v1300 = vunpack.c.l.b16 %v283
          %v1301 = vunpack.c.l.b16 %v284
          %v1302 = vunpack.c.h.b16 %v284
          %v1303 = vunpack.c.l.b16 %v285
          %v1304 = vpack.c.b16 %v1259, %v1256
          %v1305 = vpack.c.b16 %v1260, %v1257
          %v1306 = vpack.c.b16 %v1261, %v1258
          %v1307 = vpack.c.b16 %v1265, %v1262
          %v1308 = vpack.c.b16 %v1266, %v1263
          %v1309 = vpack.c.b16 %v1267, %v1264
          %v1310 = vpack.c.b16 %v1271, %v1268
          %v1311 = vpack.c.b16 %v1272, %v1269
          %v1312 = vpack.c.b16 %v1273, %v1270
          %v1313 = vpack.c.b16 %v1277, %v1274
          %v1314 = vpack.c.b16 %v1278, %v1275
          %v1315 = vpack.c.b16 %v1279, %v1276
          %v1316 = vpack.c.b16 %v1283, %v1280
          %v1317 = vpack.c.b16 %v1284, %v1281
          %v1318 = vpack.c.b16 %v1285, %v1282
          %v1319 = vpack.c.b16 %v1289, %v1286
          %v1320 = vpack.c.b16 %v1290, %v1287
          %v1321 = vpack.c.b16 %v1291, %v1288
          %v1322 = vpack.c.b16 %v1295, %v1292
          %v1323 = vpack.c.b16 %v1296, %v1293
          %v1324 = vpack.c.b16 %v1297, %v1294
          %v1325 = vpack.c.b16 %v1301, %v1298
          %v1326 = vpack.c.b16 %v1302, %v1299
          %v1327 = vpack.c.b16 %v1303, %v1300
          %1352 = vmatprep.subr.bf16.mxu0 %v1326
          %1353 = vmatpush1.bf16.msra.mxu0 %v1325
          %1354 = vmatprep.subr.bf16.mxu0 %v1323
          %1355 = vmatpush1.bf16.msra.mxu0 %v1322
          %1356 = vmatprep.subr.bf16.mxu0 %v1320
          %1357 = vmatpush1.bf16.msra.mxu0 %v1319
          %1358 = vmatprep.subr.bf16.mxu0 %v1317
          %1359 = vmatpush1.bf16.msra.mxu0 %v1316
          %1360 = vmatprep.subr.bf16.mxu0 %v1314
          %1361 = vmatpush1.bf16.msra.mxu0 %v1313
          %1362 = vmatprep.subr.bf16.mxu0 %v1311
          %1363 = vmatpush1.bf16.msra.mxu0 %v1310
          %1364 = vmatprep.subr.bf16.mxu0 %v1308
          %1365 = vmatpush1.bf16.msra.mxu0 %v1307
          %1366 = vmatprep.subr.bf16.mxu0 %v1305
          %1367 = vmatpush1.bf16.msra.mxu0 %v1304
          %1368 = vmatprep.subr.bf16.mxu0 0
          %1369 = vmatpush2.bf16.msra.mxu0 0
          %1370 = vmatprep.subr.bf16.mxu0 0
          %1371 = vmatpush2.bf16.msra.mxu0 0
          %1372 = vmatprep.subr.bf16.mxu0 0
          %1373 = vmatpush2.bf16.msra.mxu0 0
          %1374 = vmatprep.subr.bf16.mxu0 0
          %1375 = vmatpush2.bf16.msra.mxu0 0
          %1376 = vmatprep.subr.bf16.mxu0 0
          %1377 = vmatpush2.bf16.msra.mxu0 0
          %1378 = vmatprep.subr.bf16.mxu0 0
          %1379 = vmatpush2.bf16.msra.mxu0 0
          %1380 = vmatprep.subr.bf16.mxu0 0
          %1381 = vmatpush2.bf16.msra.mxu0 0
          %1382 = vmatprep.subr.bf16.mxu0 0
          %1383 = vmatpush2.bf16.msra.mxu0 0
          %1384 = vmatprep.mubr.bf16.mxu0 0
          %1385 = vmatmul.mubr.bf16.gmra.mxu0 %v1223
          %v1386 = vpop.f32.mrf.mxu0
          %v1387 = vadd.f32 0.0, %v1386
          %v1388 = vpop.f32.mrf.mxu0
          %v1389 = vadd.f32 0.0, %v1388
          %v1390 = vpop.f32.mrf.mxu0
          %v1391 = vpop.f32.mrf.mxu0
          %1392 = vdwg.mxu0
          %1393 = vmatprep.subr.bf16.mxu0 0
          %1394 = vmatpush1.bf16.msra.mxu0 %v1327
          %1395 = vmatprep.subr.bf16.mxu0 0
          %1396 = vmatpush1.bf16.msra.mxu0 %v1324
          %1397 = vmatprep.subr.bf16.mxu0 0
          %1398 = vmatpush1.bf16.msra.mxu0 %v1321
          %1399 = vmatprep.subr.bf16.mxu0 0
          %1400 = vmatpush1.bf16.msra.mxu0 %v1318
          %1401 = vmatprep.subr.bf16.mxu0 0
          %1402 = vmatpush1.bf16.msra.mxu0 %v1315
          %1403 = vmatprep.subr.bf16.mxu0 0
          %1404 = vmatpush1.bf16.msra.mxu0 %v1312
          %1405 = vmatprep.subr.bf16.mxu0 0
          %1406 = vmatpush1.bf16.msra.mxu0 %v1309
          %1407 = vmatprep.subr.bf16.mxu0 0
          %1408 = vmatpush1.bf16.msra.mxu0 %v1306
          %1409 = vmatprep.subr.bf16.mxu0 0
          %1410 = vmatpush2.bf16.msra.mxu0 0
          %1411 = vmatprep.subr.bf16.mxu0 0
          %1412 = vmatpush2.bf16.msra.mxu0 0
          %1413 = vmatprep.subr.bf16.mxu0 0
          %1414 = vmatpush2.bf16.msra.mxu0 0
          %1415 = vmatprep.subr.bf16.mxu0 0
          %1416 = vmatpush2.bf16.msra.mxu0 0
          %1417 = vmatprep.subr.bf16.mxu0 0
          %1418 = vmatpush2.bf16.msra.mxu0 0
          %1419 = vmatprep.subr.bf16.mxu0 0
          %1420 = vmatpush2.bf16.msra.mxu0 0
          %1421 = vmatprep.subr.bf16.mxu0 0
          %1422 = vmatpush2.bf16.msra.mxu0 0
          %1423 = vmatprep.subr.bf16.mxu0 0
          %1424 = vmatpush2.bf16.msra.mxu0 0
          %1425 = vmatprep.mubr.bf16.mxu0 0
          %1426 = vmatmul.mubr.bf16.gmra.mxu0 %v1223
          %v1427 = vpop.f32.mrf.mxu0
          %v1428 = vadd.f32 0.0, %v1427
          %v1429 = vpop.f32.mrf.mxu0
          %v1430 = vpop.f32.mrf.mxu0
          %v1431 = vpop.f32.mrf.mxu0
          %1432 = vdwg.mxu0
          %v1433 = vadd.f32 %v1220, %v1387
          %v1434 = vxor.u32 %v1433, 2147483648
          %v1435 = vmul.f32 %v1434, 1.442695
          %v1436 = vpow.pop %v1435
          %v1437 = vadd.f32 %v1436, 1.0
          %v1438 = vrcp.pop %v1437
          %v1439 = vmul.f32 1.0, %v1438
          %v1440 = vadd.f32 %v1221, %v1389
          %v1441 = vxor.u32 %v1440, 2147483648
          %v1442 = vmul.f32 %v1441, 1.442695
          %v1443 = vpow.pop %v1442
          %v1444 = vadd.f32 %v1443, 1.0
          %v1445 = vrcp.pop %v1444
          %v1446 = vmul.f32 1.0, %v1445
          %v1447 = vmul.f32 %v1439, %v1428
          %v1448 = vadd.f32 %v1222, %v1447
          %v1449 = vtanh.pop %v1448
          %v1450 = vsub.f32 %v1219, %v1449
          %v1451 = vmul.f32 %v1446, %v1450
          %v1452 = vadd.f32 %v1449, %v1451
          %v1453 = vld [vmem:[%s477] sm:$0xff]
          %v1454 = vld [vmem:[%s477 + $0x8] sm:$0xff]
          %v1455 = vld [vmem:[%s477 + $0x10] sm:$0xff]
          %v1456 = vpack.c.bf16 %v1452, %v1452
          %1457 = vmatprep.subr.bf16.mxu0 %v1326
          %1458 = vmatpush1.bf16.msra.mxu0 %v1325
          %1459 = vmatprep.subr.bf16.mxu0 %v1323
          %1460 = vmatpush1.bf16.msra.mxu0 %v1322
          %1461 = vmatprep.subr.bf16.mxu0 %v1320
          %1462 = vmatpush1.bf16.msra.mxu0 %v1319
          %1463 = vmatprep.subr.bf16.mxu0 %v1317
          %1464 = vmatpush1.bf16.msra.mxu0 %v1316
          %1465 = vmatprep.subr.bf16.mxu0 %v1314
          %1466 = vmatpush1.bf16.msra.mxu0 %v1313
          %1467 = vmatprep.subr.bf16.mxu0 %v1311
          %1468 = vmatpush1.bf16.msra.mxu0 %v1310
          %1469 = vmatprep.subr.bf16.mxu0 %v1308
          %1470 = vmatpush1.bf16.msra.mxu0 %v1307
          %1471 = vmatprep.subr.bf16.mxu0 %v1305
          %1472 = vmatpush1.bf16.msra.mxu0 %v1304
          %1473 = vmatprep.subr.bf16.mxu0 0
          %1474 = vmatpush2.bf16.msra.mxu0 0
          %1475 = vmatprep.subr.bf16.mxu0 0
          %1476 = vmatpush2.bf16.msra.mxu0 0
          %1477 = vmatprep.subr.bf16.mxu0 0
          %1478 = vmatpush2.bf16.msra.mxu0 0
          %1479 = vmatprep.subr.bf16.mxu0 0
          %1480 = vmatpush2.bf16.msra.mxu0 0
          %1481 = vmatprep.subr.bf16.mxu0 0
          %1482 = vmatpush2.bf16.msra.mxu0 0
          %1483 = vmatprep.subr.bf16.mxu0 0
          %1484 = vmatpush2.bf16.msra.mxu0 0
          %1485 = vmatprep.subr.bf16.mxu0 0
          %1486 = vmatpush2.bf16.msra.mxu0 0
          %1487 = vmatprep.subr.bf16.mxu0 0
          %1488 = vmatpush2.bf16.msra.mxu0 0
          %1489 = vmatprep.mubr.bf16.mxu0 0
          %1490 = vmatmul.mubr.bf16.gmra.mxu0 %v1456
          %v1491 = vpop.f32.mrf.mxu0
          %v1492 = vadd.f32 0.0, %v1491
          %v1493 = vpop.f32.mrf.mxu0
          %v1494 = vadd.f32 0.0, %v1493
          %v1495 = vpop.f32.mrf.mxu0
          %v1496 = vpop.f32.mrf.mxu0
          %1497 = vdwg.mxu0
          %1498 = vmatprep.subr.bf16.mxu0 0
          %1499 = vmatpush1.bf16.msra.mxu0 %v1327
          %1500 = vmatprep.subr.bf16.mxu0 0
          %1501 = vmatpush1.bf16.msra.mxu0 %v1324
          %1502 = vmatprep.subr.bf16.mxu0 0
          %1503 = vmatpush1.bf16.msra.mxu0 %v1321
          %1504 = vmatprep.subr.bf16.mxu0 0
          %1505 = vmatpush1.bf16.msra.mxu0 %v1318
          %1506 = vmatprep.subr.bf16.mxu0 0
          %1507 = vmatpush1.bf16.msra.mxu0 %v1315
          %1508 = vmatprep.subr.bf16.mxu0 0
          %1509 = vmatpush1.bf16.msra.mxu0 %v1312
          %1510 = vmatprep.subr.bf16.mxu0 0
          %1511 = vmatpush1.bf16.msra.mxu0 %v1309
          %1512 = vmatprep.subr.bf16.mxu0 0
          %1513 = vmatpush1.bf16.msra.mxu0 %v1306
          %1514 = vmatprep.subr.bf16.mxu0 0
          %1515 = vmatpush2.bf16.msra.mxu0 0
          %1516 = vmatprep.subr.bf16.mxu0 0
          %1517 = vmatpush2.bf16.msra.mxu0 0
          %1518 = vmatprep.subr.bf16.mxu0 0
          %1519 = vmatpush2.bf16.msra.mxu0 0
          %1520 = vmatprep.subr.bf16.mxu0 0
          %1521 = vmatpush2.bf16.msra.mxu0 0
          %1522 = vmatprep.subr.bf16.mxu0 0
          %1523 = vmatpush2.bf16.msra.mxu0 0
          %1524 = vmatprep.subr.bf16.mxu0 0
          %1525 = vmatpush2.bf16.msra.mxu0 0
          %1526 = vmatprep.subr.bf16.mxu0 0
          %1527 = vmatpush2.bf16.msra.mxu0 0
          %1528 = vmatprep.subr.bf16.mxu0 0
          %1529 = vmatpush2.bf16.msra.mxu0 0
          %1530 = vmatprep.mubr.bf16.mxu0 0
          %1531 = vmatmul.mubr.bf16.gmra.mxu0 %v1456
          %v1532 = vpop.f32.mrf.mxu0
          %v1533 = vadd.f32 0.0, %v1532
          %v1534 = vpop.f32.mrf.mxu0
          %v1535 = vpop.f32.mrf.mxu0
          %v1536 = vpop.f32.mrf.mxu0
          %1537 = vdwg.mxu0
          %v1538 = vadd.f32 %v1453, %v1492
          %v1539 = vxor.u32 %v1538, 2147483648
          %v1540 = vmul.f32 %v1539, 1.442695
          %v1541 = vpow.pop %v1540
          %v1542 = vadd.f32 %v1541, 1.0
          %v1543 = vrcp.pop %v1542
          %v1544 = vmul.f32 1.0, %v1543
          %v1545 = vadd.f32 %v1454, %v1494
          %v1546 = vxor.u32 %v1545, 2147483648
          %v1547 = vmul.f32 %v1546, 1.442695
          %v1548 = vpow.pop %v1547
          %v1549 = vadd.f32 %v1548, 1.0
          %v1550 = vrcp.pop %v1549
          %v1551 = vmul.f32 1.0, %v1550
          %v1552 = vmul.f32 %v1544, %v1533
          %v1553 = vadd.f32 %v1455, %v1552
          %v1554 = vtanh.pop %v1553
          %v1555 = vsub.f32 %v1452, %v1554
          %v1556 = vmul.f32 %v1551, %v1555
          %v1557 = vadd.f32 %v1554, %v1556
          %1558 = vst [vmem:[#allocation2] sm:$0xff] %v1557
          %v1559 = vld [vmem:[#allocation2] sm:$0xff]
          %v1560 = vpack.c.bf16 %v1559, %v1559
          %v1561 = vld [vmem:[%s3] sm:$0xf]
          %v1562 = vld [vmem:[%s3 + $0x4] sm:$0xf]
          %v1563 = vld [vmem:[%s3 + $0x8] sm:$0xf]
          %v1564 = vld [vmem:[%s3 + $0xc] sm:$0xf]
          %v1565 = vld [vmem:[%s3 + $0x10] sm:$0xf]
          %v1566 = vld [vmem:[%s3 + $0x14] sm:$0xf]
          %v1567 = vld [vmem:[%s3 + $0x18] sm:$0xf]
          %v1568 = vld [vmem:[%s3 + $0x1c] sm:$0xf]
          %v1569 = vld [vmem:[%s3 + $0x20] sm:$0xf]
          %v1570 = vld [vmem:[%s3 + $0x24] sm:$0xf]
          %v1571 = vld [vmem:[%s3 + $0x28] sm:$0xf]
          %v1572 = vld [vmem:[%s3 + $0x2c] sm:$0xf]
          %v1573 = vld [vmem:[%s3 + $0x30] sm:$0xf]
          %v1574 = vld [vmem:[%s3 + $0x34] sm:$0xf]
          %v1575 = vld [vmem:[%s3 + $0x38] sm:$0xf]
          %v1576 = vld [vmem:[%s3 + $0x3c] sm:$0xf]
          %v1593 = vunpack.c.l.b16 %v1561
          %v1594 = vunpack.c.l.b16 %v1562
          %v1595 = vunpack.c.l.b16 %v1563
          %v1596 = vunpack.c.l.b16 %v1564
          %v1597 = vunpack.c.l.b16 %v1565
          %v1598 = vunpack.c.l.b16 %v1566
          %v1599 = vunpack.c.l.b16 %v1567
          %v1600 = vunpack.c.l.b16 %v1568
          %v1601 = vunpack.c.l.b16 %v1569
          %v1602 = vunpack.c.l.b16 %v1570
          %v1603 = vunpack.c.l.b16 %v1571
          %v1604 = vunpack.c.l.b16 %v1572
          %v1605 = vunpack.c.l.b16 %v1573
          %v1606 = vunpack.c.l.b16 %v1574
          %v1607 = vunpack.c.l.b16 %v1575
          %v1608 = vunpack.c.l.b16 %v1576
          %v1609 = vpack.c.b16 %v1594, %v1593
          %v1610 = vpack.c.b16 %v1596, %v1595
          %v1611 = vpack.c.b16 %v1598, %v1597
          %v1612 = vpack.c.b16 %v1600, %v1599
          %v1613 = vpack.c.b16 %v1602, %v1601
          %v1614 = vpack.c.b16 %v1604, %v1603
          %v1615 = vpack.c.b16 %v1606, %v1605
          %v1616 = vpack.c.b16 %v1608, %v1607
          %1625 = vmatprep.subr.bf16.mxu0 0
          %1626 = vmatpush1.bf16.msra.mxu0 %v1616
          %1627 = vmatprep.subr.bf16.mxu0 0
          %1628 = vmatpush1.bf16.msra.mxu0 %v1615
          %1629 = vmatprep.subr.bf16.mxu0 0
          %1630 = vmatpush1.bf16.msra.mxu0 %v1614
          %1631 = vmatprep.subr.bf16.mxu0 0
          %1632 = vmatpush1.bf16.msra.mxu0 %v1613
          %1633 = vmatprep.subr.bf16.mxu0 0
          %1634 = vmatpush1.bf16.msra.mxu0 %v1612
          %1635 = vmatprep.subr.bf16.mxu0 0
          %1636 = vmatpush1.bf16.msra.mxu0 %v1611
          %1637 = vmatprep.subr.bf16.mxu0 0
          %1638 = vmatpush1.bf16.msra.mxu0 %v1610
          %1639 = vmatprep.subr.bf16.mxu0 0
          %1640 = vmatpush1.bf16.msra.mxu0 %v1609
          %1641 = vmatprep.subr.bf16.mxu0 0
          %1642 = vmatpush2.bf16.msra.mxu0 0
          %1643 = vmatprep.subr.bf16.mxu0 0
          %1644 = vmatpush2.bf16.msra.mxu0 0
          %1645 = vmatprep.subr.bf16.mxu0 0
          %1646 = vmatpush2.bf16.msra.mxu0 0
          %1647 = vmatprep.subr.bf16.mxu0 0
          %1648 = vmatpush2.bf16.msra.mxu0 0
          %1649 = vmatprep.subr.bf16.mxu0 0
          %1650 = vmatpush2.bf16.msra.mxu0 0
          %1651 = vmatprep.subr.bf16.mxu0 0
          %1652 = vmatpush2.bf16.msra.mxu0 0
          %1653 = vmatprep.subr.bf16.mxu0 0
          %1654 = vmatpush2.bf16.msra.mxu0 0
          %1655 = vmatprep.subr.bf16.mxu0 0
          %1656 = vmatpush2.bf16.msra.mxu0 0
          %1657 = vmatprep.mubr.bf16.mxu0 0
          %1658 = vmatmul.mubr.bf16.gmra.mxu0 %v1560
          %v1659 = vpop.f32.mrf.mxu0
          %v1660 = vadd.f32 0.0, %v1659
          %v1661 = vpop.f32.mrf.mxu0
          %v1662 = vpop.f32.mrf.mxu0
          %v1663 = vpop.f32.mrf.mxu0
          %1664 = vdwg.mxu0
          %vm1665 = vcmask 64512
          %1666 = vst.msk [vmem:[#allocation9] sm:$0xff] %vm1665, %v1660
        $region56: #{tpu_custom_call.1} parent=35 // pred_fallthru
          _
        // Predicated region
        $region57: #{tpu_custom_call.1} parent=35 // pred_check
          %p1667 = pneg %p139
        $region58: #{tpu_custom_call.1} parent=35 // pred_check_branch
          %1669 = sbr.rel (%p1667) target = $region60
        $region59: #{tpu_custom_call.1} parent=35 // pred_region
          %s1671 = ssub.s32 128, 128
          %1672 = vsyncadd [#allocation6], %s1671
          %s1673 = smul.addr %s22, 128
          %s1674 = scalar_lea.hbm %s4, %s1673
          %s1676 = sshll.u32 [#allocation9], 4
          %s1677 = int_to_ptr.vmem [resolvable:$true] %s1676
          %1679 = dma.vmem_to_hbm [thread:$0]  %s1677, 128, %s1674, [#allocation6]
        $region60: #{tpu_custom_call.1} parent=35 // pred_fallthru
          _
        // Predicated region
        $region61: #{tpu_custom_call.1} parent=35 // pred_check
          %p1680 = pneg %p139
        $region62: #{tpu_custom_call.1} parent=35 // pred_check_branch
          %1682 = sbr.rel (%p1680) target = $region64
        $region63: #{tpu_custom_call.1} parent=35 // pred_region
          %1683 = dma.done [#allocation6], 128
        $region64: #{tpu_custom_call.1} parent=35 // pred_fallthru
          _
      $region36: #{tpu_custom_call.1} parent=5 // pred_fallthru
        _
      %p1684 = scmp.le.s32.totalorder 2, %s13
      // Predicated region
      $region65: #{tpu_custom_call.1} parent=5 // pred_check
        %p1685 = pneg %p1684
      $region66: #{tpu_custom_call.1} parent=5 // pred_check_branch
        %1687 = sbr.rel (%p1685) target = $region68
      $region67: #{tpu_custom_call.1} parent=5 // pred_region
        %s1688 = ssub.s32 %s13, 2
      $region68: #{tpu_custom_call.1} parent=5 // pred_fallthru
        _
    $region6: #{tpu_custom_call.1} parent=1 // loop_footer
      %s17 = sadd.s32 1, %s13
    $region7: #{tpu_custom_call.1} parent=1 // loop_footer_branch
      %12 = sbr.rel target = $region3
    $region8: #{tpu_custom_call.1} parent=1 // loop_exit
      _
    %1689 = vsyncpa [#allocation5], 1
    %s1690 = scalar_lea.sflag [#allocation5], 1
    %1691 = vsyncpa %s1690, 1
    %1692 = vsyncpa [#allocation8], 1
    %1693 = vsyncpa [#allocation6], 1
    %s1694 = scalar_lea.sflag [#allocation6], 1
    %1695 = vsyncpa %s1694, 1

</llo_original>
